<compile_context>
chip_gen: v6e
topology: v6e:2x2x1
jax: 0.10.0
libtpu: 0.0.40
codegen_flags: <defaults>
</compile_context>

<pallas_src>
import jax
import jax.numpy as jnp
from jax.experimental import pallas as pl
from jax.experimental.pallas import tpu as pltpu

HIDDEN = 20
INPUT = 1
NGATES = 4      # PyTorch gate order: i, f, g, o
LANE = 128      # per-gate lane padding (one lane tile per gate)


def lstm_kernel(x_ref, wih_ref, whh_ref, b_ref, wl_ref, bl_ref,
                out_ref, gx_sc, hall_sc):
    """Whole-sequence LSTM + Linear forward in a single kernel invocation.

    x_ref   : (S, B, 1)             inputs (module has input_size == 1)
    wih_ref : (1, 4*LANE)           W_ih^T; gate k lives in lanes [k*LANE, k*LANE+H)
    whh_ref : (LANE, 4*LANE)        W_hh^T, same per-gate lane padding; rows >= H are zero
    b_ref   : (1, 4*LANE)           b_ih + b_hh, padded the same way
    wl_ref  : (1, LANE)             Linear(H -> 1) weight; lanes >= H are zero
    bl_ref  : (1, 1)                Linear bias
    out_ref : (B, S)                lane-dense output slab (single HBM writeback)
    gx_sc   : (S, B, 4*LANE) VMEM   precomputed input projection + bias for all steps
    hall_sc : (S, B, LANE)   VMEM   hidden-state history for the hoisted Linear
    """
    S, B, _ = x_ref.shape
    HP = LANE

    # ---- Phase 1: input projection for every timestep at once. ----------------
    # input_size == 1, so x @ W_ih^T is a lane-broadcast multiply (pure VPU work,
    # no per-step MXU push); the combined bias is folded in here as well.
    gx_sc[...] = x_ref[...] * wih_ref[...] + b_ref[...]            # (S, B, 4*HP)

    whh = whh_ref[...]                                             # (HP, 4*HP)

    # ---- Phase 2: sequential recurrence over time. -----------------------------
    # S is a small static constant, so a plain Python loop gives a fully-unrolled
    # body (static ref indices everywhere, full scheduler visibility); h/c stay in
    # vregs across steps. Padded lanes (>= H) of h/c remain exactly 0 because the
    # padded weight columns/rows and biases are 0 (so their gates are sigmoid(0),
    # tanh(0) acting on zero state).
    h = jnp.zeros((B, HP), jnp.float32)
    c = jnp.zeros((B, HP), jnp.float32)
    for t in range(S):
        gates = gx_sc[t] + jnp.dot(h, whh, preferred_element_type=jnp.float32)
        # 128-lane, tile-aligned gate slices: no cross-lane shuffles in the loop.
        i_g = jax.nn.sigmoid(gates[:, 0 * HP:1 * HP])
        f_g = jax.nn.sigmoid(gates[:, 1 * HP:2 * HP])
        g_g = jnp.tanh(gates[:, 2 * HP:3 * HP])
        o_g = jax.nn.sigmoid(gates[:, 3 * HP:4 * HP])
        c = f_g * c + i_g * g_g
        h = o_g * jnp.tanh(c)
        hall_sc[t] = h

    # ---- Phase 3: hoisted Linear(H -> 1) over all steps + one dense store. -----
    y_sb = jnp.sum(hall_sc[...] * wl_ref[...], axis=-1)            # (S, B)
    out_ref[...] = (jnp.transpose(y_sb) + bl_ref[...]).astype(out_ref.dtype)


def lstm_forward(x, packed_params):
    """x: (S, B, 1) float32  ->  (B, S, 1) float32 (same contract as the nn.Module)."""
    S, B, I = x.shape
    assert I == INPUT == 1, "kernel specializes the module's input_size == 1"
    wih_p, whh_p, b_p, wl_p, bl_p = packed_params

    out_bs = pl.pallas_call(
        lstm_kernel,
        out_shape=jax.ShapeDtypeStruct((B, S), jnp.float32),
        # No grid: the whole (tiny) problem is resident in VMEM for one invocation;
        # every input/output is a full-array VMEM block (no per-step pipelining,
        # no per-step HBM stores). The recurrence must stay sequential, and it is,
        # inside the single kernel body.
        scratch_shapes=[
            pltpu.VMEM((S, B, NGATES * LANE), jnp.float32),        # gates_x
            pltpu.VMEM((S, B, LANE), jnp.float32),                 # h_t history
        ],
    )(x, wih_p, whh_p, b_p, wl_p, bl_p)

    # (B, S) -> (B, S, 1): only appends a trailing unit dim, no transpose pass.
    return out_bs[:, :, None]


def init_raw_params(key, hidden=HIDDEN, inp=INPUT):
    """PyTorch-style uniform(-1/sqrt(H), 1/sqrt(H)) init, raw nn.LSTM/nn.Linear layout."""
    k = 1.0 / jnp.sqrt(jnp.float32(hidden))
    keys = jax.random.split(key, 6)
    w_ih = jax.random.uniform(keys[0], (4 * hidden, inp), jnp.float32, -k, k)
    w_hh = jax.random.uniform(keys[1], (4 * hidden, hidden), jnp.float32, -k, k)
    b_ih = jax.random.uniform(keys[2], (4 * hidden,), jnp.float32, -k, k)
    b_hh = jax.random.uniform(keys[3], (4 * hidden,), jnp.float32, -k, k)
    w_lin = jax.random.uniform(keys[4], (1, hidden), jnp.float32, -k, k)
    b_lin = jax.random.uniform(keys[5], (1,), jnp.float32, -k, k)
    return (w_ih, w_hh, b_ih, b_hh, w_lin, b_lin)


def pack_params(raw, hidden=HIDDEN, lane=LANE):
    """Pad each gate's weights/bias into its own 128-lane block and pre-transpose."""
    w_ih, w_hh, b_ih, b_hh, w_lin, b_lin = raw
    H = hidden
    I = w_ih.shape[1]
    b = b_ih + b_hh
    wih_p = jnp.zeros((I, NGATES * lane), jnp.float32)
    whh_p = jnp.zeros((lane, NGATES * lane), jnp.float32)
    b_p = jnp.zeros((1, NGATES * lane), jnp.float32)
    for g in range(NGATES):
        wih_p = wih_p.at[:, g * lane:g * lane + H].set(w_ih[g * H:(g + 1) * H, :].T)
        whh_p = whh_p.at[:H, g * lane:g * lane + H].set(w_hh[g * H:(g + 1) * H, :].T)
        b_p = b_p.at[0, g * lane:g * lane + H].set(b[g * H:(g + 1) * H])
    wl_p = jnp.zeros((1, lane), jnp.float32).at[0, :H].set(w_lin[0])
    bl_p = b_lin.reshape(1, 1).astype(jnp.float32)
    return (wih_p, whh_p, b_p, wl_p, bl_p)


def reference_forward(x, raw_params):
    """Pure-JAX reference matching torch.nn.LSTM + Linear semantics."""
    w_ih, w_hh, b_ih, b_hh, w_lin, b_lin = raw_params
    S, B, _ = x.shape
    H = w_hh.shape[1]

    def step(carry, x_t):
        h, c = carry
        gates = x_t @ w_ih.T + b_ih + h @ w_hh.T + b_hh
        i = jax.nn.sigmoid(gates[:, 0 * H:1 * H])
        f = jax.nn.sigmoid(gates[:, 1 * H:2 * H])
        g = jnp.tanh(gates[:, 2 * H:3 * H])
        o = jax.nn.sigmoid(gates[:, 3 * H:4 * H])
        c = f * c + i * g
        h = o * jnp.tanh(c)
        return (h, c), h

    h0 = jnp.zeros((B, H), jnp.float32)
    c0 = jnp.zeros((B, H), jnp.float32)
    _, hs = jax.lax.scan(step, (h0, c0), x)         # (S, B, H)
    out = hs @ w_lin.T + b_lin                      # (S, B, 1)
    return jnp.transpose(out, (1, 0, 2))            # (B, S, 1)


if __name__ == "__main__":
    key = jax.random.PRNGKey(0)
    k_x, k_p = jax.random.split(key)

    seq_len, batch = 8, 2
    x = jax.random.normal(k_x, (seq_len, batch, INPUT), jnp.float32)

    raw_params = init_raw_params(k_p)
    packed_params = pack_params(raw_params)

    out = lstm_forward(x, packed_params)
    out = jax.block_until_ready(out)
    assert out.shape == (batch, seq_len, 1), out.shape

    ref = reference_forward(x, raw_params)
    assert jnp.allclose(out, ref, atol=1e-3, rtol=1e-3), (
        float(jnp.max(jnp.abs(out - ref))))

    print("KERNEL_OK")
</pallas_src>

<mosaic_0001>
module attributes {stable_mosaic.version = 11 : i64} {
  func.func @lstm_kernel(%arg0: memref<8x2x1xf32, #tpu.memory_space<vmem>>, %arg1: memref<1x512xf32, #tpu.memory_space<vmem>>, %arg2: memref<128x512xf32, #tpu.memory_space<vmem>>, %arg3: memref<1x512xf32, #tpu.memory_space<vmem>>, %arg4: memref<1x128xf32, #tpu.memory_space<vmem>>, %arg5: memref<1x1xf32, #tpu.memory_space<vmem>>, %arg6: memref<2x8xf32, #tpu.memory_space<vmem>>, %arg7: memref<8x2x512xf32, #tpu.memory_space<vmem>>, %arg8: memref<8x2x128xf32, #tpu.memory_space<vmem>>) attributes {dimension_semantics = [], scalar_prefetch = 0 : i64, scratch_operands = 2 : i64, tpu.core_type = #tpu.core_type<tc>} {
    %c0 = arith.constant 0 : index
    %c0_0 = arith.constant 0 : index
    %c0_1 = arith.constant 0 : index
    %0 = vector.load %arg0[%c0, %c0_0, %c0_1] : memref<8x2x1xf32, #tpu.memory_space<vmem>>, vector<8x2x1xf32>
    %c0_2 = arith.constant 0 : index
    %c0_3 = arith.constant 0 : index
    %1 = vector.load %arg1[%c0_2, %c0_3] : memref<1x512xf32, #tpu.memory_space<vmem>>, vector<1x512xf32>
    %2 = vector.shape_cast %1 : vector<1x512xf32> to vector<1x1x512xf32>
    %3 = vector.broadcast %0 : vector<8x2x1xf32> to vector<8x2x512xf32>
    %4 = vector.broadcast %2 : vector<1x1x512xf32> to vector<8x2x512xf32>
    %5 = arith.mulf %3, %4 : vector<8x2x512xf32>
    %c0_4 = arith.constant 0 : index
    %c0_5 = arith.constant 0 : index
    %6 = vector.load %arg3[%c0_4, %c0_5] : memref<1x512xf32, #tpu.memory_space<vmem>>, vector<1x512xf32>
    %7 = vector.shape_cast %6 : vector<1x512xf32> to vector<1x1x512xf32>
    %8 = vector.broadcast %7 : vector<1x1x512xf32> to vector<8x2x512xf32>
    %9 = arith.addf %5, %8 : vector<8x2x512xf32>
    %c0_6 = arith.constant 0 : index
    %c0_7 = arith.constant 0 : index
    %c0_8 = arith.constant 0 : index
    %10 = vector.load %arg7[%c0_6, %c0_7, %c0_8] : memref<8x2x512xf32, #tpu.memory_space<vmem>>, vector<8x2x512xf32>
    tpu.vector_store %arg7[%c0_6, %c0_7, %c0_8], %9 {strides = array<i32>} : memref<8x2x512xf32, #tpu.memory_space<vmem>>, vector<8x2x512xf32>,
    %c0_9 = arith.constant 0 : index
    %c0_10 = arith.constant 0 : index
    %11 = vector.load %arg2[%c0_9, %c0_10] : memref<128x512xf32, #tpu.memory_space<vmem>>, vector<128x512xf32>
    %cst = arith.constant 0.000000e+00 : f32
    %12 = vector.broadcast %cst : f32 to vector<2x128xf32>
    %cst_11 = arith.constant 0.000000e+00 : f32
    %13 = vector.broadcast %cst_11 : f32 to vector<2x128xf32>
    %c0_12 = arith.constant 0 : index
    %c0_13 = arith.constant 0 : index
    %c0_14 = arith.constant 0 : index
    %14 = vector.load %arg7[%c0_12, %c0_13, %c0_14] : memref<8x2x512xf32, #tpu.memory_space<vmem>>, vector<1x2x512xf32>
    %15 = vector.shape_cast %14 : vector<1x2x512xf32> to vector<2x512xf32>
    %cst_15 = arith.constant dense<0.000000e+00> : vector<2x512xf32>
    %16 = tpu.matmul %12, %11, %cst_15 {dimension_numbers = #tpu.dot_dimension_numbers<[1], [0], [0], [1], [0, 0, 1, 1], [], []>} : vector<2x128xf32>, vector<128x512xf32>, vector<2x512xf32> -> vector<2x512xf32>
    %17 = arith.addf %15, %16 : vector<2x512xf32>
    %18 = vector.extract_strided_slice %17 {offsets = [0, 0], sizes = [2, 128], strides = [1, 1]} : vector<2x512xf32> to vector<2x128xf32>
    %19 = arith.negf %18 : vector<2x128xf32>
    %20 = math.exp %19 : vector<2x128xf32>
    %cst_16 = arith.constant 1.000000e+00 : f32
    %21 = vector.broadcast %cst_16 : f32 to vector<2x128xf32>
    %22 = arith.addf %21, %20 : vector<2x128xf32>
    %23 = arith.divf %21, %22 : vector<2x128xf32>
    %24 = vector.extract_strided_slice %17 {offsets = [0, 128], sizes = [2, 128], strides = [1, 1]} : vector<2x512xf32> to vector<2x128xf32>
    %25 = arith.negf %24 : vector<2x128xf32>
    %26 = math.exp %25 : vector<2x128xf32>
    %cst_17 = arith.constant 1.000000e+00 : f32
    %27 = vector.broadcast %cst_17 : f32 to vector<2x128xf32>
    %28 = arith.addf %27, %26 : vector<2x128xf32>
    %29 = arith.divf %27, %28 : vector<2x128xf32>
    %30 = vector.extract_strided_slice %17 {offsets = [0, 256], sizes = [2, 128], strides = [1, 1]} : vector<2x512xf32> to vector<2x128xf32>
    %31 = math.tanh %30 : vector<2x128xf32>
    %32 = vector.extract_strided_slice %17 {offsets = [0, 384], sizes = [2, 128], strides = [1, 1]} : vector<2x512xf32> to vector<2x128xf32>
    %33 = arith.negf %32 : vector<2x128xf32>
    %34 = math.exp %33 : vector<2x128xf32>
    %cst_18 = arith.constant 1.000000e+00 : f32
    %35 = vector.broadcast %cst_18 : f32 to vector<2x128xf32>
    %36 = arith.addf %35, %34 : vector<2x128xf32>
    %37 = arith.divf %35, %36 : vector<2x128xf32>
    %38 = arith.mulf %29, %13 : vector<2x128xf32>
    %39 = arith.mulf %23, %31 : vector<2x128xf32>
    %40 = arith.addf %38, %39 : vector<2x128xf32>
    %41 = math.tanh %40 : vector<2x128xf32>
    %42 = arith.mulf %37, %41 : vector<2x128xf32>
    %c0_19 = arith.constant 0 : index
    %c0_20 = arith.constant 0 : index
    %c0_21 = arith.constant 0 : index
    %43 = vector.load %arg8[%c0_19, %c0_20, %c0_21] : memref<8x2x128xf32, #tpu.memory_space<vmem>>, vector<1x2x128xf32>
    %44 = vector.shape_cast %43 : vector<1x2x128xf32> to vector<2x128xf32>
    %45 = vector.shape_cast %42 : vector<2x128xf32> to vector<1x2x128xf32>
    tpu.vector_store %arg8[%c0_19, %c0_20, %c0_21], %45 {strides = array<i32>} : memref<8x2x128xf32, #tpu.memory_space<vmem>>, vector<1x2x128xf32>,
    %c1 = arith.constant 1 : index
    %c0_22 = arith.constant 0 : index
    %c0_23 = arith.constant 0 : index
    %46 = vector.load %arg7[%c1, %c0_22, %c0_23] : memref<8x2x512xf32, #tpu.memory_space<vmem>>, vector<1x2x512xf32>
    %47 = vector.shape_cast %46 : vector<1x2x512xf32> to vector<2x512xf32>
    %cst_24 = arith.constant dense<0.000000e+00> : vector<2x512xf32>
    %48 = tpu.matmul %42, %11, %cst_24 {dimension_numbers = #tpu.dot_dimension_numbers<[1], [0], [0], [1], [0, 0, 1, 1], [], []>} : vector<2x128xf32>, vector<128x512xf32>, vector<2x512xf32> -> vector<2x512xf32>
    %49 = arith.addf %47, %48 : vector<2x512xf32>
    %50 = vector.extract_strided_slice %49 {offsets = [0, 0], sizes = [2, 128], strides = [1, 1]} : vector<2x512xf32> to vector<2x128xf32>
    %51 = arith.negf %50 : vector<2x128xf32>
    %52 = math.exp %51 : vector<2x128xf32>
    %cst_25 = arith.constant 1.000000e+00 : f32
    %53 = vector.broadcast %cst_25 : f32 to vector<2x128xf32>
    %54 = arith.addf %53, %52 : vector<2x128xf32>
    %55 = arith.divf %53, %54 : vector<2x128xf32>
    %56 = vector.extract_strided_slice %49 {offsets = [0, 128], sizes = [2, 128], strides = [1, 1]} : vector<2x512xf32> to vector<2x128xf32>
    %57 = arith.negf %56 : vector<2x128xf32>
    %58 = math.exp %57 : vector<2x128xf32>
    %cst_26 = arith.constant 1.000000e+00 : f32
    %59 = vector.broadcast %cst_26 : f32 to vector<2x128xf32>
    %60 = arith.addf %59, %58 : vector<2x128xf32>
    %61 = arith.divf %59, %60 : vector<2x128xf32>
    %62 = vector.extract_strided_slice %49 {offsets = [0, 256], sizes = [2, 128], strides = [1, 1]} : vector<2x512xf32> to vector<2x128xf32>
    %63 = math.tanh %62 : vector<2x128xf32>
    %64 = vector.extract_strided_slice %49 {offsets = [0, 384], sizes = [2, 128], strides = [1, 1]} : vector<2x512xf32> to vector<2x128xf32>
    %65 = arith.negf %64 : vector<2x128xf32>
    %66 = math.exp %65 : vector<2x128xf32>
    %cst_27 = arith.constant 1.000000e+00 : f32
    %67 = vector.broadcast %cst_27 : f32 to vector<2x128xf32>
    %68 = arith.addf %67, %66 : vector<2x128xf32>
    %69 = arith.divf %67, %68 : vector<2x128xf32>
    %70 = arith.mulf %61, %40 : vector<2x128xf32>
    %71 = arith.mulf %55, %63 : vector<2x128xf32>
    %72 = arith.addf %70, %71 : vector<2x128xf32>
    %73 = math.tanh %72 : vector<2x128xf32>
    %74 = arith.mulf %69, %73 : vector<2x128xf32>
    %c1_28 = arith.constant 1 : index
    %c0_29 = arith.constant 0 : index
    %c0_30 = arith.constant 0 : index
    %75 = vector.load %arg8[%c1_28, %c0_29, %c0_30] : memref<8x2x128xf32, #tpu.memory_space<vmem>>, vector<1x2x128xf32>
    %76 = vector.shape_cast %75 : vector<1x2x128xf32> to vector<2x128xf32>
    %77 = vector.shape_cast %74 : vector<2x128xf32> to vector<1x2x128xf32>
    tpu.vector_store %arg8[%c1_28, %c0_29, %c0_30], %77 {strides = array<i32>} : memref<8x2x128xf32, #tpu.memory_space<vmem>>, vector<1x2x128xf32>,
    %c2 = arith.constant 2 : index
    %c0_31 = arith.constant 0 : index
    %c0_32 = arith.constant 0 : index
    %78 = vector.load %arg7[%c2, %c0_31, %c0_32] : memref<8x2x512xf32, #tpu.memory_space<vmem>>, vector<1x2x512xf32>
    %79 = vector.shape_cast %78 : vector<1x2x512xf32> to vector<2x512xf32>
    %cst_33 = arith.constant dense<0.000000e+00> : vector<2x512xf32>
    %80 = tpu.matmul %74, %11, %cst_33 {dimension_numbers = #tpu.dot_dimension_numbers<[1], [0], [0], [1], [0, 0, 1, 1], [], []>} : vector<2x128xf32>, vector<128x512xf32>, vector<2x512xf32> -> vector<2x512xf32>
    %81 = arith.addf %79, %80 : vector<2x512xf32>
    %82 = vector.extract_strided_slice %81 {offsets = [0, 0], sizes = [2, 128], strides = [1, 1]} : vector<2x512xf32> to vector<2x128xf32>
    %83 = arith.negf %82 : vector<2x128xf32>
    %84 = math.exp %83 : vector<2x128xf32>
    %cst_34 = arith.constant 1.000000e+00 : f32
    %85 = vector.broadcast %cst_34 : f32 to vector<2x128xf32>
    %86 = arith.addf %85, %84 : vector<2x128xf32>
    %87 = arith.divf %85, %86 : vector<2x128xf32>
    %88 = vector.extract_strided_slice %81 {offsets = [0, 128], sizes = [2, 128], strides = [1, 1]} : vector<2x512xf32> to vector<2x128xf32>
    %89 = arith.negf %88 : vector<2x128xf32>
    %90 = math.exp %89 : vector<2x128xf32>
    %cst_35 = arith.constant 1.000000e+00 : f32
    %91 = vector.broadcast %cst_35 : f32 to vector<2x128xf32>
    %92 = arith.addf %91, %90 : vector<2x128xf32>
    %93 = arith.divf %91, %92 : vector<2x128xf32>
    %94 = vector.extract_strided_slice %81 {offsets = [0, 256], sizes = [2, 128], strides = [1, 1]} : vector<2x512xf32> to vector<2x128xf32>
    %95 = math.tanh %94 : vector<2x128xf32>
    %96 = vector.extract_strided_slice %81 {offsets = [0, 384], sizes = [2, 128], strides = [1, 1]} : vector<2x512xf32> to vector<2x128xf32>
    %97 = arith.negf %96 : vector<2x128xf32>
    %98 = math.exp %97 : vector<2x128xf32>
    %cst_36 = arith.constant 1.000000e+00 : f32
    %99 = vector.broadcast %cst_36 : f32 to vector<2x128xf32>
    %100 = arith.addf %99, %98 : vector<2x128xf32>
    %101 = arith.divf %99, %100 : vector<2x128xf32>
    %102 = arith.mulf %93, %72 : vector<2x128xf32>
    %103 = arith.mulf %87, %95 : vector<2x128xf32>
    %104 = arith.addf %102, %103 : vector<2x128xf32>
    %105 = math.tanh %104 : vector<2x128xf32>
    %106 = arith.mulf %101, %105 : vector<2x128xf32>
    %c2_37 = arith.constant 2 : index
    %c0_38 = arith.constant 0 : index
    %c0_39 = arith.constant 0 : index
    %107 = vector.load %arg8[%c2_37, %c0_38, %c0_39] : memref<8x2x128xf32, #tpu.memory_space<vmem>>, vector<1x2x128xf32>
    %108 = vector.shape_cast %107 : vector<1x2x128xf32> to vector<2x128xf32>
    %109 = vector.shape_cast %106 : vector<2x128xf32> to vector<1x2x128xf32>
    tpu.vector_store %arg8[%c2_37, %c0_38, %c0_39], %109 {strides = array<i32>} : memref<8x2x128xf32, #tpu.memory_space<vmem>>, vector<1x2x128xf32>,
    %c3 = arith.constant 3 : index
    %c0_40 = arith.constant 0 : index
    %c0_41 = arith.constant 0 : index
    %110 = vector.load %arg7[%c3, %c0_40, %c0_41] : memref<8x2x512xf32, #tpu.memory_space<vmem>>, vector<1x2x512xf32>
    %111 = vector.shape_cast %110 : vector<1x2x512xf32> to vector<2x512xf32>
    %cst_42 = arith.constant dense<0.000000e+00> : vector<2x512xf32>
    %112 = tpu.matmul %106, %11, %cst_42 {dimension_numbers = #tpu.dot_dimension_numbers<[1], [0], [0], [1], [0, 0, 1, 1], [], []>} : vector<2x128xf32>, vector<128x512xf32>, vector<2x512xf32> -> vector<2x512xf32>
    %113 = arith.addf %111, %112 : vector<2x512xf32>
    %114 = vector.extract_strided_slice %113 {offsets = [0, 0], sizes = [2, 128], strides = [1, 1]} : vector<2x512xf32> to vector<2x128xf32>
    %115 = arith.negf %114 : vector<2x128xf32>
    %116 = math.exp %115 : vector<2x128xf32>
    %cst_43 = arith.constant 1.000000e+00 : f32
    %117 = vector.broadcast %cst_43 : f32 to vector<2x128xf32>
    %118 = arith.addf %117, %116 : vector<2x128xf32>
    %119 = arith.divf %117, %118 : vector<2x128xf32>
    %120 = vector.extract_strided_slice %113 {offsets = [0, 128], sizes = [2, 128], strides = [1, 1]} : vector<2x512xf32> to vector<2x128xf32>
    %121 = arith.negf %120 : vector<2x128xf32>
    %122 = math.exp %121 : vector<2x128xf32>
    %cst_44 = arith.constant 1.000000e+00 : f32
    %123 = vector.broadcast %cst_44 : f32 to vector<2x128xf32>
    %124 = arith.addf %123, %122 : vector<2x128xf32>
    %125 = arith.divf %123, %124 : vector<2x128xf32>
    %126 = vector.extract_strided_slice %113 {offsets = [0, 256], sizes = [2, 128], strides = [1, 1]} : vector<2x512xf32> to vector<2x128xf32>
    %127 = math.tanh %126 : vector<2x128xf32>
    %128 = vector.extract_strided_slice %113 {offsets = [0, 384], sizes = [2, 128], strides = [1, 1]} : vector<2x512xf32> to vector<2x128xf32>
    %129 = arith.negf %128 : vector<2x128xf32>
    %130 = math.exp %129 : vector<2x128xf32>
    %cst_45 = arith.constant 1.000000e+00 : f32
    %131 = vector.broadcast %cst_45 : f32 to vector<2x128xf32>
    %132 = arith.addf %131, %130 : vector<2x128xf32>
    %133 = arith.divf %131, %132 : vector<2x128xf32>
    %134 = arith.mulf %125, %104 : vector<2x128xf32>
    %135 = arith.mulf %119, %127 : vector<2x128xf32>
    %136 = arith.addf %134, %135 : vector<2x128xf32>
    %137 = math.tanh %136 : vector<2x128xf32>
    %138 = arith.mulf %133, %137 : vector<2x128xf32>
    %c3_46 = arith.constant 3 : index
    %c0_47 = arith.constant 0 : index
    %c0_48 = arith.constant 0 : index
    %139 = vector.load %arg8[%c3_46, %c0_47, %c0_48] : memref<8x2x128xf32, #tpu.memory_space<vmem>>, vector<1x2x128xf32>
    %140 = vector.shape_cast %139 : vector<1x2x128xf32> to vector<2x128xf32>
    %141 = vector.shape_cast %138 : vector<2x128xf32> to vector<1x2x128xf32>
    tpu.vector_store %arg8[%c3_46, %c0_47, %c0_48], %141 {strides = array<i32>} : memref<8x2x128xf32, #tpu.memory_space<vmem>>, vector<1x2x128xf32>,
    %c4 = arith.constant 4 : index
    %c0_49 = arith.constant 0 : index
    %c0_50 = arith.constant 0 : index
    %142 = vector.load %arg7[%c4, %c0_49, %c0_50] : memref<8x2x512xf32, #tpu.memory_space<vmem>>, vector<1x2x512xf32>
    %143 = vector.shape_cast %142 : vector<1x2x512xf32> to vector<2x512xf32>
    %cst_51 = arith.constant dense<0.000000e+00> : vector<2x512xf32>
    %144 = tpu.matmul %138, %11, %cst_51 {dimension_numbers = #tpu.dot_dimension_numbers<[1], [0], [0], [1], [0, 0, 1, 1], [], []>} : vector<2x128xf32>, vector<128x512xf32>, vector<2x512xf32> -> vector<2x512xf32>
    %145 = arith.addf %143, %144 : vector<2x512xf32>
    %146 = vector.extract_strided_slice %145 {offsets = [0, 0], sizes = [2, 128], strides = [1, 1]} : vector<2x512xf32> to vector<2x128xf32>
    %147 = arith.negf %146 : vector<2x128xf32>
    %148 = math.exp %147 : vector<2x128xf32>
    %cst_52 = arith.constant 1.000000e+00 : f32
    %149 = vector.broadcast %cst_52 : f32 to vector<2x128xf32>
    %150 = arith.addf %149, %148 : vector<2x128xf32>
    %151 = arith.divf %149, %150 : vector<2x128xf32>
    %152 = vector.extract_strided_slice %145 {offsets = [0, 128], sizes = [2, 128], strides = [1, 1]} : vector<2x512xf32> to vector<2x128xf32>
    %153 = arith.negf %152 : vector<2x128xf32>
    %154 = math.exp %153 : vector<2x128xf32>
    %cst_53 = arith.constant 1.000000e+00 : f32
    %155 = vector.broadcast %cst_53 : f32 to vector<2x128xf32>
    %156 = arith.addf %155, %154 : vector<2x128xf32>
    %157 = arith.divf %155, %156 : vector<2x128xf32>
    %158 = vector.extract_strided_slice %145 {offsets = [0, 256], sizes = [2, 128], strides = [1, 1]} : vector<2x512xf32> to vector<2x128xf32>
    %159 = math.tanh %158 : vector<2x128xf32>
    %160 = vector.extract_strided_slice %145 {offsets = [0, 384], sizes = [2, 128], strides = [1, 1]} : vector<2x512xf32> to vector<2x128xf32>
    %161 = arith.negf %160 : vector<2x128xf32>
    %162 = math.exp %161 : vector<2x128xf32>
    %cst_54 = arith.constant 1.000000e+00 : f32
    %163 = vector.broadcast %cst_54 : f32 to vector<2x128xf32>
    %164 = arith.addf %163, %162 : vector<2x128xf32>
    %165 = arith.divf %163, %164 : vector<2x128xf32>
    %166 = arith.mulf %157, %136 : vector<2x128xf32>
    %167 = arith.mulf %151, %159 : vector<2x128xf32>
    %168 = arith.addf %166, %167 : vector<2x128xf32>
    %169 = math.tanh %168 : vector<2x128xf32>
    %170 = arith.mulf %165, %169 : vector<2x128xf32>
    %c4_55 = arith.constant 4 : index
    %c0_56 = arith.constant 0 : index
    %c0_57 = arith.constant 0 : index
    %171 = vector.load %arg8[%c4_55, %c0_56, %c0_57] : memref<8x2x128xf32, #tpu.memory_space<vmem>>, vector<1x2x128xf32>
    %172 = vector.shape_cast %171 : vector<1x2x128xf32> to vector<2x128xf32>
    %173 = vector.shape_cast %170 : vector<2x128xf32> to vector<1x2x128xf32>
    tpu.vector_store %arg8[%c4_55, %c0_56, %c0_57], %173 {strides = array<i32>} : memref<8x2x128xf32, #tpu.memory_space<vmem>>, vector<1x2x128xf32>,
    %c5 = arith.constant 5 : index
    %c0_58 = arith.constant 0 : index
    %c0_59 = arith.constant 0 : index
    %174 = vector.load %arg7[%c5, %c0_58, %c0_59] : memref<8x2x512xf32, #tpu.memory_space<vmem>>, vector<1x2x512xf32>
    %175 = vector.shape_cast %174 : vector<1x2x512xf32> to vector<2x512xf32>
    %cst_60 = arith.constant dense<0.000000e+00> : vector<2x512xf32>
    %176 = tpu.matmul %170, %11, %cst_60 {dimension_numbers = #tpu.dot_dimension_numbers<[1], [0], [0], [1], [0, 0, 1, 1], [], []>} : vector<2x128xf32>, vector<128x512xf32>, vector<2x512xf32> -> vector<2x512xf32>
    %177 = arith.addf %175, %176 : vector<2x512xf32>
    %178 = vector.extract_strided_slice %177 {offsets = [0, 0], sizes = [2, 128], strides = [1, 1]} : vector<2x512xf32> to vector<2x128xf32>
    %179 = arith.negf %178 : vector<2x128xf32>
    %180 = math.exp %179 : vector<2x128xf32>
    %cst_61 = arith.constant 1.000000e+00 : f32
    %181 = vector.broadcast %cst_61 : f32 to vector<2x128xf32>
    %182 = arith.addf %181, %180 : vector<2x128xf32>
    %183 = arith.divf %181, %182 : vector<2x128xf32>
    %184 = vector.extract_strided_slice %177 {offsets = [0, 128], sizes = [2, 128], strides = [1, 1]} : vector<2x512xf32> to vector<2x128xf32>
    %185 = arith.negf %184 : vector<2x128xf32>
    %186 = math.exp %185 : vector<2x128xf32>
    %cst_62 = arith.constant 1.000000e+00 : f32
    %187 = vector.broadcast %cst_62 : f32 to vector<2x128xf32>
    %188 = arith.addf %187, %186 : vector<2x128xf32>
    %189 = arith.divf %187, %188 : vector<2x128xf32>
    %190 = vector.extract_strided_slice %177 {offsets = [0, 256], sizes = [2, 128], strides = [1, 1]} : vector<2x512xf32> to vector<2x128xf32>
    %191 = math.tanh %190 : vector<2x128xf32>
    %192 = vector.extract_strided_slice %177 {offsets = [0, 384], sizes = [2, 128], strides = [1, 1]} : vector<2x512xf32> to vector<2x128xf32>
    %193 = arith.negf %192 : vector<2x128xf32>
    %194 = math.exp %193 : vector<2x128xf32>
    %cst_63 = arith.constant 1.000000e+00 : f32
    %195 = vector.broadcast %cst_63 : f32 to vector<2x128xf32>
    %196 = arith.addf %195, %194 : vector<2x128xf32>
    %197 = arith.divf %195, %196 : vector<2x128xf32>
    %198 = arith.mulf %189, %168 : vector<2x128xf32>
    %199 = arith.mulf %183, %191 : vector<2x128xf32>
    %200 = arith.addf %198, %199 : vector<2x128xf32>
    %201 = math.tanh %200 : vector<2x128xf32>
    %202 = arith.mulf %197, %201 : vector<2x128xf32>
    %c5_64 = arith.constant 5 : index
    %c0_65 = arith.constant 0 : index
    %c0_66 = arith.constant 0 : index
    %203 = vector.load %arg8[%c5_64, %c0_65, %c0_66] : memref<8x2x128xf32, #tpu.memory_space<vmem>>, vector<1x2x128xf32>
    %204 = vector.shape_cast %203 : vector<1x2x128xf32> to vector<2x128xf32>
    %205 = vector.shape_cast %202 : vector<2x128xf32> to vector<1x2x128xf32>
    tpu.vector_store %arg8[%c5_64, %c0_65, %c0_66], %205 {strides = array<i32>} : memref<8x2x128xf32, #tpu.memory_space<vmem>>, vector<1x2x128xf32>,
    %c6 = arith.constant 6 : index
    %c0_67 = arith.constant 0 : index
    %c0_68 = arith.constant 0 : index
    %206 = vector.load %arg7[%c6, %c0_67, %c0_68] : memref<8x2x512xf32, #tpu.memory_space<vmem>>, vector<1x2x512xf32>
    %207 = vector.shape_cast %206 : vector<1x2x512xf32> to vector<2x512xf32>
    %cst_69 = arith.constant dense<0.000000e+00> : vector<2x512xf32>
    %208 = tpu.matmul %202, %11, %cst_69 {dimension_numbers = #tpu.dot_dimension_numbers<[1], [0], [0], [1], [0, 0, 1, 1], [], []>} : vector<2x128xf32>, vector<128x512xf32>, vector<2x512xf32> -> vector<2x512xf32>
    %209 = arith.addf %207, %208 : vector<2x512xf32>
    %210 = vector.extract_strided_slice %209 {offsets = [0, 0], sizes = [2, 128], strides = [1, 1]} : vector<2x512xf32> to vector<2x128xf32>
    %211 = arith.negf %210 : vector<2x128xf32>
    %212 = math.exp %211 : vector<2x128xf32>
    %cst_70 = arith.constant 1.000000e+00 : f32
    %213 = vector.broadcast %cst_70 : f32 to vector<2x128xf32>
    %214 = arith.addf %213, %212 : vector<2x128xf32>
    %215 = arith.divf %213, %214 : vector<2x128xf32>
    %216 = vector.extract_strided_slice %209 {offsets = [0, 128], sizes = [2, 128], strides = [1, 1]} : vector<2x512xf32> to vector<2x128xf32>
    %217 = arith.negf %216 : vector<2x128xf32>
    %218 = math.exp %217 : vector<2x128xf32>
    %cst_71 = arith.constant 1.000000e+00 : f32
    %219 = vector.broadcast %cst_71 : f32 to vector<2x128xf32>
    %220 = arith.addf %219, %218 : vector<2x128xf32>
    %221 = arith.divf %219, %220 : vector<2x128xf32>
    %222 = vector.extract_strided_slice %209 {offsets = [0, 256], sizes = [2, 128], strides = [1, 1]} : vector<2x512xf32> to vector<2x128xf32>
    %223 = math.tanh %222 : vector<2x128xf32>
    %224 = vector.extract_strided_slice %209 {offsets = [0, 384], sizes = [2, 128], strides = [1, 1]} : vector<2x512xf32> to vector<2x128xf32>
    %225 = arith.negf %224 : vector<2x128xf32>
    %226 = math.exp %225 : vector<2x128xf32>
    %cst_72 = arith.constant 1.000000e+00 : f32
    %227 = vector.broadcast %cst_72 : f32 to vector<2x128xf32>
    %228 = arith.addf %227, %226 : vector<2x128xf32>
    %229 = arith.divf %227, %228 : vector<2x128xf32>
    %230 = arith.mulf %221, %200 : vector<2x128xf32>
    %231 = arith.mulf %215, %223 : vector<2x128xf32>
    %232 = arith.addf %230, %231 : vector<2x128xf32>
    %233 = math.tanh %232 : vector<2x128xf32>
    %234 = arith.mulf %229, %233 : vector<2x128xf32>
    %c6_73 = arith.constant 6 : index
    %c0_74 = arith.constant 0 : index
    %c0_75 = arith.constant 0 : index
    %235 = vector.load %arg8[%c6_73, %c0_74, %c0_75] : memref<8x2x128xf32, #tpu.memory_space<vmem>>, vector<1x2x128xf32>
    %236 = vector.shape_cast %235 : vector<1x2x128xf32> to vector<2x128xf32>
    %237 = vector.shape_cast %234 : vector<2x128xf32> to vector<1x2x128xf32>
    tpu.vector_store %arg8[%c6_73, %c0_74, %c0_75], %237 {strides = array<i32>} : memref<8x2x128xf32, #tpu.memory_space<vmem>>, vector<1x2x128xf32>,
    %c7 = arith.constant 7 : index
    %c0_76 = arith.constant 0 : index
    %c0_77 = arith.constant 0 : index
    %238 = vector.load %arg7[%c7, %c0_76, %c0_77] : memref<8x2x512xf32, #tpu.memory_space<vmem>>, vector<1x2x512xf32>
    %239 = vector.shape_cast %238 : vector<1x2x512xf32> to vector<2x512xf32>
    %cst_78 = arith.constant dense<0.000000e+00> : vector<2x512xf32>
    %240 = tpu.matmul %234, %11, %cst_78 {dimension_numbers = #tpu.dot_dimension_numbers<[1], [0], [0], [1], [0, 0, 1, 1], [], []>} : vector<2x128xf32>, vector<128x512xf32>, vector<2x512xf32> -> vector<2x512xf32>
    %241 = arith.addf %239, %240 : vector<2x512xf32>
    %242 = vector.extract_strided_slice %241 {offsets = [0, 0], sizes = [2, 128], strides = [1, 1]} : vector<2x512xf32> to vector<2x128xf32>
    %243 = arith.negf %242 : vector<2x128xf32>
    %244 = math.exp %243 : vector<2x128xf32>
    %cst_79 = arith.constant 1.000000e+00 : f32
    %245 = vector.broadcast %cst_79 : f32 to vector<2x128xf32>
    %246 = arith.addf %245, %244 : vector<2x128xf32>
    %247 = arith.divf %245, %246 : vector<2x128xf32>
    %248 = vector.extract_strided_slice %241 {offsets = [0, 128], sizes = [2, 128], strides = [1, 1]} : vector<2x512xf32> to vector<2x128xf32>
    %249 = arith.negf %248 : vector<2x128xf32>
    %250 = math.exp %249 : vector<2x128xf32>
    %cst_80 = arith.constant 1.000000e+00 : f32
    %251 = vector.broadcast %cst_80 : f32 to vector<2x128xf32>
    %252 = arith.addf %251, %250 : vector<2x128xf32>
    %253 = arith.divf %251, %252 : vector<2x128xf32>
    %254 = vector.extract_strided_slice %241 {offsets = [0, 256], sizes = [2, 128], strides = [1, 1]} : vector<2x512xf32> to vector<2x128xf32>
    %255 = math.tanh %254 : vector<2x128xf32>
    %256 = vector.extract_strided_slice %241 {offsets = [0, 384], sizes = [2, 128], strides = [1, 1]} : vector<2x512xf32> to vector<2x128xf32>
    %257 = arith.negf %256 : vector<2x128xf32>
    %258 = math.exp %257 : vector<2x128xf32>
    %cst_81 = arith.constant 1.000000e+00 : f32
    %259 = vector.broadcast %cst_81 : f32 to vector<2x128xf32>
    %260 = arith.addf %259, %258 : vector<2x128xf32>
    %261 = arith.divf %259, %260 : vector<2x128xf32>
    %262 = arith.mulf %253, %232 : vector<2x128xf32>
    %263 = arith.mulf %247, %255 : vector<2x128xf32>
    %264 = arith.addf %262, %263 : vector<2x128xf32>
    %265 = math.tanh %264 : vector<2x128xf32>
    %266 = arith.mulf %261, %265 : vector<2x128xf32>
    %c7_82 = arith.constant 7 : index
    %c0_83 = arith.constant 0 : index
    %c0_84 = arith.constant 0 : index
    %267 = vector.load %arg8[%c7_82, %c0_83, %c0_84] : memref<8x2x128xf32, #tpu.memory_space<vmem>>, vector<1x2x128xf32>
    %268 = vector.shape_cast %267 : vector<1x2x128xf32> to vector<2x128xf32>
    %269 = vector.shape_cast %266 : vector<2x128xf32> to vector<1x2x128xf32>
    tpu.vector_store %arg8[%c7_82, %c0_83, %c0_84], %269 {strides = array<i32>} : memref<8x2x128xf32, #tpu.memory_space<vmem>>, vector<1x2x128xf32>,
    %c0_85 = arith.constant 0 : index
    %c0_86 = arith.constant 0 : index
    %c0_87 = arith.constant 0 : index
    %270 = vector.load %arg8[%c0_85, %c0_86, %c0_87] : memref<8x2x128xf32, #tpu.memory_space<vmem>>, vector<8x2x128xf32>
    %c0_88 = arith.constant 0 : index
    %c0_89 = arith.constant 0 : index
    %271 = vector.load %arg4[%c0_88, %c0_89] : memref<1x128xf32, #tpu.memory_space<vmem>>, vector<1x128xf32>
    %272 = vector.shape_cast %271 : vector<1x128xf32> to vector<1x1x128xf32>
    %273 = vector.broadcast %272 : vector<1x1x128xf32> to vector<8x2x128xf32>
    %274 = arith.mulf %270, %273 : vector<8x2x128xf32>
    %cst_90 = arith.constant dense<0.000000e+00> : vector<8x2xf32>
    %275 = vector.multi_reduction <add>, %274, %cst_90 [2] : vector<8x2x128xf32> to vector<8x2xf32>
    %276 = tpu.transpose %275, [1, 0] : vector<8x2xf32> -> vector<2x8xf32>
    %c0_91 = arith.constant 0 : index
    %c0_92 = arith.constant 0 : index
    %277 = vector.load %arg5[%c0_91, %c0_92] : memref<1x1xf32, #tpu.memory_space<vmem>>, vector<1x1xf32>
    %278 = vector.broadcast %277 : vector<1x1xf32> to vector<2x8xf32>
    %279 = arith.addf %276, %278 : vector<2x8xf32>
    %c0_93 = arith.constant 0 : index
    %c0_94 = arith.constant 0 : index
    %280 = vector.load %arg6[%c0_93, %c0_94] : memref<2x8xf32, #tpu.memory_space<vmem>>, vector<2x8xf32>
    tpu.vector_store %arg6[%c0_93, %c0_94], %279 {strides = array<i32>} : memref<2x8xf32, #tpu.memory_space<vmem>>, vector<2x8xf32>,
    return
  }
}

</mosaic_0001>

<llo_original>
// kernel: tpu_custom_call.1
$region0: #{tpu_custom_call.1}
  #allocation0 [shape = 'u32[]', space=smem, size = 0x4, offset = 0x4, fixed_abs, tag = 'smem constant byte address 0x4 - core index']
  #allocation1 [shape = 'u32[144,128]{1,0:T(1,128)}', space=vmem, size = 0x12000, scoped, tag = 'internal scratch']
  #allocation2 [shape = 'f32[8,2,512]{2,1,0:T(2,128)}', space=vmem, size = 0x8000, scoped, tag = 'scratch operand']
  #allocation3 [shape = 'f32[8,2,128]{2,1,0:T(2,128)}', space=vmem, size = 0x2000, scoped, tag = 'scratch operand']
  #allocation4 [shape = 'f32[1,1]{1,0:T(1,128)S(1)}', space=vmem, size = 0x200, scoped, tag = 'scoped memory for tpu_custom_call.1']
  %s0 = inlined_call_operand.vmem [shape: f32[8,2,1], index: 0, kind: input, shape index: {}]
  %s1 = inlined_call_operand.vmem [shape: f32[1,512], index: 1, kind: input, shape index: {}]
  %s2 = inlined_call_operand.hbm [shape: f32[128,512], index: 2, kind: input, shape index: {}]
  %s3 = inlined_call_operand.vmem [shape: f32[1,512], index: 3, kind: input, shape index: {}]
  %s4 = inlined_call_operand.vmem [shape: f32[1,128], index: 4, kind: input, shape index: {}]
  %s5 = inlined_call_operand.<no memory space> [shape: f32[1,1], index: 5, kind: input, shape index: {}]
  %s6 = inlined_call_operand.hbm [shape: f32[2,8], index: 6, kind: output, shape index: {}]
  %s7 = sld [smem:[#allocation0]]
  $region38: #{tpu_custom_call.1} parent=0
    _
  %s9 = ssub.s32 1, %s7
  %s10 = scalar_select 0, %s9, %s7
  %v11 = vstv %s5
  %12 = vst [vmem:[#allocation4] sm:$0x1] %v11
  $region1: #{tpu_custom_call.1} parent=0
    #allocation5 [shape = 'u8[262144]{0}', space=vmem, size = 0x40000, scoped, tag = 'input window, operand 2, single buffered']
    #allocation6 [shape = 's32[1]{0}', space=sflag, size = 0x4, scoped, tag = 'scoped memory for tpu_custom_call.1']
    #allocation7 [shape = 's32[1]{0}', space=sflag, size = 0x4, scoped, tag = 'scoped memory for tpu_custom_call.1']
    #allocation8 [shape = 'u8[1024]{0}', space=vmem, size = 0x400, scoped, tag = 'output window, operand 0, single buffered']
    %13 = vsyncpa [#allocation6], 0
    %14 = vsyncpa [#allocation7], 0
    // Predicated region
    $region2: #{tpu_custom_call.1} parent=1 // pred_check
      _
    $region3: #{tpu_custom_call.1} parent=1 // pred_check_branch
      %16 = sbr.rel (0) target = $region5
    $region4: #{tpu_custom_call.1} parent=1 // pred_region
      _
    $region5: #{tpu_custom_call.1} parent=1 // pred_fallthru
      _
    // Predicated region
    $region6: #{tpu_custom_call.1} parent=1 // pred_check
      _
    $region7: #{tpu_custom_call.1} parent=1 // pred_check_branch
      %18 = sbr.rel (0) target = $region9
    $region8: #{tpu_custom_call.1} parent=1 // pred_region
      _
    $region9: #{tpu_custom_call.1} parent=1 // pred_fallthru
      _
    // Predicated region
    $region10: #{tpu_custom_call.1} parent=1 // pred_check
      _
    $region11: #{tpu_custom_call.1} parent=1 // pred_check_branch
      %20 = sbr.rel (0) target = $region13
    $region12: #{tpu_custom_call.1} parent=1 // pred_region
      %s22 = ssub.s32 8192, 8192
      %23 = vsyncadd [#allocation6], %s22
      %s24 = sshll.u32 [#allocation5], 4
      %s25 = int_to_ptr.vmem [resolvable:$true] %s24
      %30 = dma.hbm_to_vmem [thread:$0]  %s2, 8192, %s25, [#allocation6], 512, 512, 32
    $region13: #{tpu_custom_call.1} parent=1 // pred_fallthru
      _
    // Predicated region
    $region14: #{tpu_custom_call.1} parent=1 // pred_check
      _
    $region15: #{tpu_custom_call.1} parent=1 // pred_check_branch
      %32 = sbr.rel (0) target = $region17
    $region16: #{tpu_custom_call.1} parent=1 // pred_region
      _
    $region17: #{tpu_custom_call.1} parent=1 // pred_fallthru
      _
    // Predicated region
    $region18: #{tpu_custom_call.1} parent=1 // pred_check
      _
    $region19: #{tpu_custom_call.1} parent=1 // pred_check_branch
      %34 = sbr.rel (0) target = $region21
    $region20: #{tpu_custom_call.1} parent=1 // pred_region
      _
    $region21: #{tpu_custom_call.1} parent=1 // pred_fallthru
      _
    // Predicated region
    $region22: #{tpu_custom_call.1} parent=1 // pred_check
      _
    $region23: #{tpu_custom_call.1} parent=1 // pred_check_branch
      %36 = sbr.rel (0) target = $region25
    $region24: #{tpu_custom_call.1} parent=1 // pred_region
      _
    $region25: #{tpu_custom_call.1} parent=1 // pred_fallthru
      _
    // Predicated region
    $region26: #{tpu_custom_call.1} parent=1 // pred_check
      _
    $region27: #{tpu_custom_call.1} parent=1 // pred_check_branch
      %38 = sbr.rel (0) target = $region29
    $region28: #{tpu_custom_call.1} parent=1 // pred_region
      %39 = dma.done [#allocation6], 8192
    $region29: #{tpu_custom_call.1} parent=1 // pred_fallthru
      _
    %v40 = vld [vmem:[%s0] sm:$0x3]
    %v41 = vld [vmem:[%s0 + $0x2] sm:$0x3]
    %v42 = vld [vmem:[%s0 + $0x4] sm:$0x3]
    %v43 = vld [vmem:[%s0 + $0x6] sm:$0x3]
    %v44 = vld [vmem:[%s0 + $0x8] sm:$0x3]
    %v45 = vld [vmem:[%s0 + $0xa] sm:$0x3]
    %v46 = vld [vmem:[%s0 + $0xc] sm:$0x3]
    %v47 = vld [vmem:[%s0 + $0xe] sm:$0x3]
    %v48 = vld [vmem:[%s1] sm:$0xf]
    %50 = vset.pattern.permute.xlu0 0
    %51 = vperm.xlu0 %50, %v40
    %v52 = vpop.permute.xlu0 %51
    %55 = vset.pattern.permute.xlu0 0
    %56 = vperm.xlu0 %55, %v41
    %v57 = vpop.permute.xlu0 %56
    %60 = vset.pattern.permute.xlu0 0
    %61 = vperm.xlu0 %60, %v42
    %v62 = vpop.permute.xlu0 %61
    %65 = vset.pattern.permute.xlu0 0
    %66 = vperm.xlu0 %65, %v43
    %v67 = vpop.permute.xlu0 %66
    %70 = vset.pattern.permute.xlu0 0
    %71 = vperm.xlu0 %70, %v44
    %v72 = vpop.permute.xlu0 %71
    %75 = vset.pattern.permute.xlu0 0
    %76 = vperm.xlu0 %75, %v45
    %v77 = vpop.permute.xlu0 %76
    %80 = vset.pattern.permute.xlu0 0
    %81 = vperm.xlu0 %80, %v46
    %v82 = vpop.permute.xlu0 %81
    %85 = vset.pattern.permute.xlu0 0
    %86 = vperm.xlu0 %85, %v47
    %v87 = vpop.permute.xlu0 %86
    %v90 = vlaneseq
    %v91 = vshrl.u32 %v90, 7
    %v92 = vsub.s32 0, %v91
    %v93 = vrot.slane %v48, %v92
    %v94 = vlaneseq
    %v95 = vshrl.u32 %v94, 7
    %v96 = vsub.s32 1, %v95
    %v97 = vrot.slane %v48, %v96
    %v98 = vlaneseq
    %v99 = vshrl.u32 %v98, 7
    %v100 = vsub.s32 2, %v99
    %v101 = vrot.slane %v48, %v100
    %v102 = vlaneseq
    %v103 = vshrl.u32 %v102, 7
    %v104 = vsub.s32 3, %v103
    %v105 = vrot.slane %v48, %v104
    %v110 = vmul.f32 %v52, %v93
    %v111 = vmul.f32 %v52, %v97
    %v112 = vmul.f32 %v52, %v101
    %v113 = vmul.f32 %v52, %v105
    %v114 = vmul.f32 %v57, %v93
    %v115 = vmul.f32 %v57, %v97
    %v116 = vmul.f32 %v57, %v101
    %v117 = vmul.f32 %v57, %v105
    %v118 = vmul.f32 %v62, %v93
    %v119 = vmul.f32 %v62, %v97
    %v120 = vmul.f32 %v62, %v101
    %v121 = vmul.f32 %v62, %v105
    %v122 = vmul.f32 %v67, %v93
    %v123 = vmul.f32 %v67, %v97
    %v124 = vmul.f32 %v67, %v101
    %v125 = vmul.f32 %v67, %v105
    %v126 = vmul.f32 %v72, %v93
    %v127 = vmul.f32 %v72, %v97
    %v128 = vmul.f32 %v72, %v101
    %v129 = vmul.f32 %v72, %v105
    %v130 = vmul.f32 %v77, %v93
    %v131 = vmul.f32 %v77, %v97
    %v132 = vmul.f32 %v77, %v101
    %v133 = vmul.f32 %v77, %v105
    %v134 = vmul.f32 %v82, %v93
    %v135 = vmul.f32 %v82, %v97
    %v136 = vmul.f32 %v82, %v101
    %v137 = vmul.f32 %v82, %v105
    %v138 = vmul.f32 %v87, %v93
    %v139 = vmul.f32 %v87, %v97
    %v140 = vmul.f32 %v87, %v101
    %v141 = vmul.f32 %v87, %v105
    %v142 = vld [vmem:[%s3] sm:$0xf]
    %v144 = vlaneseq
    %v145 = vshrl.u32 %v144, 7
    %v146 = vsub.s32 0, %v145
    %v147 = vrot.slane %v142, %v146
    %v148 = vlaneseq
    %v149 = vshrl.u32 %v148, 7
    %v150 = vsub.s32 1, %v149
    %v151 = vrot.slane %v142, %v150
    %v152 = vlaneseq
    %v153 = vshrl.u32 %v152, 7
    %v154 = vsub.s32 2, %v153
    %v155 = vrot.slane %v142, %v154
    %v156 = vlaneseq
    %v157 = vshrl.u32 %v156, 7
    %v158 = vsub.s32 3, %v157
    %v159 = vrot.slane %v142, %v158
    %v164 = vadd.f32 %v110, %v147
    %v165 = vadd.f32 %v111, %v151
    %v166 = vadd.f32 %v112, %v155
    %v167 = vadd.f32 %v113, %v159
    %v168 = vadd.f32 %v114, %v147
    %v169 = vadd.f32 %v115, %v151
    %v170 = vadd.f32 %v116, %v155
    %v171 = vadd.f32 %v117, %v159
    %v172 = vadd.f32 %v118, %v147
    %v173 = vadd.f32 %v119, %v151
    %v174 = vadd.f32 %v120, %v155
    %v175 = vadd.f32 %v121, %v159
    %v176 = vadd.f32 %v122, %v147
    %v177 = vadd.f32 %v123, %v151
    %v178 = vadd.f32 %v124, %v155
    %v179 = vadd.f32 %v125, %v159
    %v180 = vadd.f32 %v126, %v147
    %v181 = vadd.f32 %v127, %v151
    %v182 = vadd.f32 %v128, %v155
    %v183 = vadd.f32 %v129, %v159
    %v184 = vadd.f32 %v130, %v147
    %v185 = vadd.f32 %v131, %v151
    %v186 = vadd.f32 %v132, %v155
    %v187 = vadd.f32 %v133, %v159
    %v188 = vadd.f32 %v134, %v147
    %v189 = vadd.f32 %v135, %v151
    %v190 = vadd.f32 %v136, %v155
    %v191 = vadd.f32 %v137, %v159
    %v192 = vadd.f32 %v138, %v147
    %v193 = vadd.f32 %v139, %v151
    %v194 = vadd.f32 %v140, %v155
    %v195 = vadd.f32 %v141, %v159
    %v228 = vcombine.low %v164, %v165
    %v229 = vcombine.low %v166, %v167
    %v231 = vunpack.c.l.s4 1983009808
    %v232 = vunpack.c.0.s8 %v231
    %v233 = vlaneseq
    %v234 = vshrl.u32 %v233, 7
    %v235 = vsub.s32 %v232, %v234
    %v236 = vrot.slane %v228, %v235
    %v238 = vunpack.c.l.s4 1983009808
    %v239 = vunpack.c.0.s8 %v238
    %v240 = vlaneseq
    %v241 = vshrl.u32 %v240, 7
    %v242 = vsub.s32 %v239, %v241
    %v243 = vrot.slane %v229, %v242
    %v244 = vcombine.low %v236, %v243
    %v245 = vcombine.low %v168, %v169
    %v246 = vcombine.low %v170, %v171
    %v248 = vunpack.c.l.s4 1983009808
    %v249 = vunpack.c.0.s8 %v248
    %v250 = vlaneseq
    %v251 = vshrl.u32 %v250, 7
    %v252 = vsub.s32 %v249, %v251
    %v253 = vrot.slane %v245, %v252
    %v255 = vunpack.c.l.s4 1983009808
    %v256 = vunpack.c.0.s8 %v255
    %v257 = vlaneseq
    %v258 = vshrl.u32 %v257, 7
    %v259 = vsub.s32 %v256, %v258
    %v260 = vrot.slane %v246, %v259
    %v261 = vcombine.low %v253, %v260
    %v262 = vcombine.low %v172, %v173
    %v263 = vcombine.low %v174, %v175
    %v265 = vunpack.c.l.s4 1983009808
    %v266 = vunpack.c.0.s8 %v265
    %v267 = vlaneseq
    %v268 = vshrl.u32 %v267, 7
    %v269 = vsub.s32 %v266, %v268
    %v270 = vrot.slane %v262, %v269
    %v272 = vunpack.c.l.s4 1983009808
    %v273 = vunpack.c.0.s8 %v272
    %v274 = vlaneseq
    %v275 = vshrl.u32 %v274, 7
    %v276 = vsub.s32 %v273, %v275
    %v277 = vrot.slane %v263, %v276
    %v278 = vcombine.low %v270, %v277
    %v279 = vcombine.low %v176, %v177
    %v280 = vcombine.low %v178, %v179
    %v282 = vunpack.c.l.s4 1983009808
    %v283 = vunpack.c.0.s8 %v282
    %v284 = vlaneseq
    %v285 = vshrl.u32 %v284, 7
    %v286 = vsub.s32 %v283, %v285
    %v287 = vrot.slane %v279, %v286
    %v289 = vunpack.c.l.s4 1983009808
    %v290 = vunpack.c.0.s8 %v289
    %v291 = vlaneseq
    %v292 = vshrl.u32 %v291, 7
    %v293 = vsub.s32 %v290, %v292
    %v294 = vrot.slane %v280, %v293
    %v295 = vcombine.low %v287, %v294
    %v296 = vcombine.low %v180, %v181
    %v297 = vcombine.low %v182, %v183
    %v299 = vunpack.c.l.s4 1983009808
    %v300 = vunpack.c.0.s8 %v299
    %v301 = vlaneseq
    %v302 = vshrl.u32 %v301, 7
    %v303 = vsub.s32 %v300, %v302
    %v304 = vrot.slane %v296, %v303
    %v306 = vunpack.c.l.s4 1983009808
    %v307 = vunpack.c.0.s8 %v306
    %v308 = vlaneseq
    %v309 = vshrl.u32 %v308, 7
    %v310 = vsub.s32 %v307, %v309
    %v311 = vrot.slane %v297, %v310
    %v312 = vcombine.low %v304, %v311
    %v313 = vcombine.low %v184, %v185
    %v314 = vcombine.low %v186, %v187
    %v316 = vunpack.c.l.s4 1983009808
    %v317 = vunpack.c.0.s8 %v316
    %v318 = vlaneseq
    %v319 = vshrl.u32 %v318, 7
    %v320 = vsub.s32 %v317, %v319
    %v321 = vrot.slane %v313, %v320
    %v323 = vunpack.c.l.s4 1983009808
    %v324 = vunpack.c.0.s8 %v323
    %v325 = vlaneseq
    %v326 = vshrl.u32 %v325, 7
    %v327 = vsub.s32 %v324, %v326
    %v328 = vrot.slane %v314, %v327
    %v329 = vcombine.low %v321, %v328
    %v330 = vcombine.low %v188, %v189
    %v331 = vcombine.low %v190, %v191
    %v333 = vunpack.c.l.s4 1983009808
    %v334 = vunpack.c.0.s8 %v333
    %v335 = vlaneseq
    %v336 = vshrl.u32 %v335, 7
    %v337 = vsub.s32 %v334, %v336
    %v338 = vrot.slane %v330, %v337
    %v340 = vunpack.c.l.s4 1983009808
    %v341 = vunpack.c.0.s8 %v340
    %v342 = vlaneseq
    %v343 = vshrl.u32 %v342, 7
    %v344 = vsub.s32 %v341, %v343
    %v345 = vrot.slane %v331, %v344
    %v346 = vcombine.low %v338, %v345
    %v347 = vcombine.low %v192, %v193
    %v348 = vcombine.low %v194, %v195
    %v350 = vunpack.c.l.s4 1983009808
    %v351 = vunpack.c.0.s8 %v350
    %v352 = vlaneseq
    %v353 = vshrl.u32 %v352, 7
    %v354 = vsub.s32 %v351, %v353
    %v355 = vrot.slane %v347, %v354
    %v357 = vunpack.c.l.s4 1983009808
    %v358 = vunpack.c.0.s8 %v357
    %v359 = vlaneseq
    %v360 = vshrl.u32 %v359, 7
    %v361 = vsub.s32 %v358, %v360
    %v362 = vrot.slane %v348, %v361
    %v363 = vcombine.low %v355, %v362
    %372 = vst [vmem:[#allocation2] sm:$0xff] %v244
    %373 = vst [vmem:[#allocation2 + $0x8] sm:$0xff] %v261
    %374 = vst [vmem:[#allocation2 + $0x10] sm:$0xff] %v278
    %375 = vst [vmem:[#allocation2 + $0x18] sm:$0xff] %v295
    %376 = vst [vmem:[#allocation2 + $0x20] sm:$0xff] %v312
    %377 = vst [vmem:[#allocation2 + $0x28] sm:$0xff] %v329
    %378 = vst [vmem:[#allocation2 + $0x30] sm:$0xff] %v346
    %379 = vst [vmem:[#allocation2 + $0x38] sm:$0xff] %v363
    %v380 = vld [vmem:[#allocation5] sm:$0xff]
    %v381 = vld [vmem:[#allocation5 + $0x8] sm:$0xff]
    %v382 = vld [vmem:[#allocation5 + $0x10] sm:$0xff]
    %v383 = vld [vmem:[#allocation5 + $0x18] sm:$0xff]
    %v384 = vld [vmem:[#allocation5 + $0x20] sm:$0xff]
    %v385 = vld [vmem:[#allocation5 + $0x28] sm:$0xff]
    %v386 = vld [vmem:[#allocation5 + $0x30] sm:$0xff]
    %v387 = vld [vmem:[#allocation5 + $0x38] sm:$0xff]
    %v388 = vld [vmem:[#allocation5 + $0x40] sm:$0xff]
    %v389 = vld [vmem:[#allocation5 + $0x48] sm:$0xff]
    %v390 = vld [vmem:[#allocation5 + $0x50] sm:$0xff]
    %v391 = vld [vmem:[#allocation5 + $0x58] sm:$0xff]
    %v392 = vld [vmem:[#allocation5 + $0x60] sm:$0xff]
    %v393 = vld [vmem:[#allocation5 + $0x68] sm:$0xff]
    %v394 = vld [vmem:[#allocation5 + $0x70] sm:$0xff]
    %v395 = vld [vmem:[#allocation5 + $0x78] sm:$0xff]
    %v396 = vld [vmem:[#allocation5 + $0x80] sm:$0xff]
    %v397 = vld [vmem:[#allocation5 + $0x88] sm:$0xff]
    %v398 = vld [vmem:[#allocation5 + $0x90] sm:$0xff]
    %v399 = vld [vmem:[#allocation5 + $0x98] sm:$0xff]
    %v400 = vld [vmem:[#allocation5 + $0xa0] sm:$0xff]
    %v401 = vld [vmem:[#allocation5 + $0xa8] sm:$0xff]
    %v402 = vld [vmem:[#allocation5 + $0xb0] sm:$0xff]
    %v403 = vld [vmem:[#allocation5 + $0xb8] sm:$0xff]
    %v404 = vld [vmem:[#allocation5 + $0xc0] sm:$0xff]
    %v405 = vld [vmem:[#allocation5 + $0xc8] sm:$0xff]
    %v406 = vld [vmem:[#allocation5 + $0xd0] sm:$0xff]
    %v407 = vld [vmem:[#allocation5 + $0xd8] sm:$0xff]
    %v408 = vld [vmem:[#allocation5 + $0xe0] sm:$0xff]
    %v409 = vld [vmem:[#allocation5 + $0xe8] sm:$0xff]
    %v410 = vld [vmem:[#allocation5 + $0xf0] sm:$0xff]
    %v411 = vld [vmem:[#allocation5 + $0xf8] sm:$0xff]
    %v412 = vld [vmem:[#allocation5 + $0x100] sm:$0xff]
    %v413 = vld [vmem:[#allocation5 + $0x108] sm:$0xff]
    %v414 = vld [vmem:[#allocation5 + $0x110] sm:$0xff]
    %v415 = vld [vmem:[#allocation5 + $0x118] sm:$0xff]
    %v416 = vld [vmem:[#allocation5 + $0x120] sm:$0xff]
    %v417 = vld [vmem:[#allocation5 + $0x128] sm:$0xff]
    %v418 = vld [vmem:[#allocation5 + $0x130] sm:$0xff]
    %v419 = vld [vmem:[#allocation5 + $0x138] sm:$0xff]
    %v420 = vld [vmem:[#allocation5 + $0x140] sm:$0xff]
    %v421 = vld [vmem:[#allocation5 + $0x148] sm:$0xff]
    %v422 = vld [vmem:[#allocation5 + $0x150] sm:$0xff]
    %v423 = vld [vmem:[#allocation5 + $0x158] sm:$0xff]
    %v424 = vld [vmem:[#allocation5 + $0x160] sm:$0xff]
    %v425 = vld [vmem:[#allocation5 + $0x168] sm:$0xff]
    %v426 = vld [vmem:[#allocation5 + $0x170] sm:$0xff]
    %v427 = vld [vmem:[#allocation5 + $0x178] sm:$0xff]
    %v428 = vld [vmem:[#allocation5 + $0x180] sm:$0xff]
    %v429 = vld [vmem:[#allocation5 + $0x188] sm:$0xff]
    %v430 = vld [vmem:[#allocation5 + $0x190] sm:$0xff]
    %v431 = vld [vmem:[#allocation5 + $0x198] sm:$0xff]
    %v432 = vld [vmem:[#allocation5 + $0x1a0] sm:$0xff]
    %v433 = vld [vmem:[#allocation5 + $0x1a8] sm:$0xff]
    %v434 = vld [vmem:[#allocation5 + $0x1b0] sm:$0xff]
    %v435 = vld [vmem:[#allocation5 + $0x1b8] sm:$0xff]
    %v436 = vld [vmem:[#allocation5 + $0x1c0] sm:$0xff]
    %v437 = vld [vmem:[#allocation5 + $0x1c8] sm:$0xff]
    %v438 = vld [vmem:[#allocation5 + $0x1d0] sm:$0xff]
    %v439 = vld [vmem:[#allocation5 + $0x1d8] sm:$0xff]
    %v440 = vld [vmem:[#allocation5 + $0x1e0] sm:$0xff]
    %v441 = vld [vmem:[#allocation5 + $0x1e8] sm:$0xff]
    %v442 = vld [vmem:[#allocation5 + $0x1f0] sm:$0xff]
    %v443 = vld [vmem:[#allocation5 + $0x1f8] sm:$0xff]
    %v444 = vld [vmem:[#allocation2] sm:$0xff]
    %445 = vmatprep.subr.mxu0 %v441
    %446 = vmatpush1.msra.mxu0 %v440
    %447 = vmatprep.subr.mxu0 %v437
    %448 = vmatpush1.msra.mxu0 %v436
    %449 = vmatprep.subr.mxu0 %v433
    %450 = vmatpush1.msra.mxu0 %v432
    %451 = vmatprep.subr.mxu0 %v429
    %452 = vmatpush1.msra.mxu0 %v428
    %453 = vmatprep.subr.mxu0 %v425
    %454 = vmatpush1.msra.mxu0 %v424
    %455 = vmatprep.subr.mxu0 %v421
    %456 = vmatpush1.msra.mxu0 %v420
    %457 = vmatprep.subr.mxu0 %v417
    %458 = vmatpush1.msra.mxu0 %v416
    %459 = vmatprep.subr.mxu0 %v413
    %460 = vmatpush1.msra.mxu0 %v412
    %461 = vmatprep.subr.mxu0 %v409
    %462 = vmatpush1.msra.mxu0 %v408
    %463 = vmatprep.subr.mxu0 %v405
    %464 = vmatpush1.msra.mxu0 %v404
    %465 = vmatprep.subr.mxu0 %v401
    %466 = vmatpush1.msra.mxu0 %v400
    %467 = vmatprep.subr.mxu0 %v397
    %468 = vmatpush1.msra.mxu0 %v396
    %469 = vmatprep.subr.mxu0 %v393
    %470 = vmatpush1.msra.mxu0 %v392
    %471 = vmatprep.subr.mxu0 %v389
    %472 = vmatpush1.msra.mxu0 %v388
    %473 = vmatprep.subr.mxu0 %v385
    %474 = vmatpush1.msra.mxu0 %v384
    %475 = vmatprep.subr.mxu0 %v381
    %476 = vmatpush1.msra.mxu0 %v380
    %477 = vmatprep.subr.mxu0 0.0
    %478 = vmatpush2.msra.mxu0 0.0
    %479 = vmatprep.subr.mxu0 0.0
    %480 = vmatpush2.msra.mxu0 0.0
    %481 = vmatprep.subr.mxu0 0.0
    %482 = vmatpush2.msra.mxu0 0.0
    %483 = vmatprep.subr.mxu0 0.0
    %484 = vmatpush2.msra.mxu0 0.0
    %485 = vmatprep.subr.mxu0 0.0
    %486 = vmatpush2.msra.mxu0 0.0
    %487 = vmatprep.subr.mxu0 0.0
    %488 = vmatpush2.msra.mxu0 0.0
    %489 = vmatprep.subr.mxu0 0.0
    %490 = vmatpush2.msra.mxu0 0.0
    %491 = vmatprep.subr.mxu0 0.0
    %492 = vmatpush2.msra.mxu0 0.0
    %493 = vmatprep.subr.mxu0 0.0
    %494 = vmatpush2.msra.mxu0 0.0
    %495 = vmatprep.subr.mxu0 0.0
    %496 = vmatpush2.msra.mxu0 0.0
    %497 = vmatprep.subr.mxu0 0.0
    %498 = vmatpush2.msra.mxu0 0.0
    %499 = vmatprep.subr.mxu0 0.0
    %500 = vmatpush2.msra.mxu0 0.0
    %501 = vmatprep.subr.mxu0 0.0
    %502 = vmatpush2.msra.mxu0 0.0
    %503 = vmatprep.subr.mxu0 0.0
    %504 = vmatpush2.msra.mxu0 0.0
    %505 = vmatprep.subr.mxu0 0.0
    %506 = vmatpush2.msra.mxu0 0.0
    %507 = vmatprep.subr.mxu0 0.0
    %508 = vmatpush2.msra.mxu0 0.0
    %509 = vmatprep.mubr.f32.mxu0 0.0
    %510 = vmatmul.mubr.f32.gmra.mxu0 0.0
    %v511 = vpop.f32.mrf.mxu0
    %v512 = vadd.f32 0.0, %v511
    %v513 = vpop.f32.mrf.mxu0
    %v514 = vadd.f32 0.0, %v513
    %515 = vdwg.mxu0
    %516 = vmatprep.subr.mxu0 %v443
    %517 = vmatpush1.msra.mxu0 %v442
    %518 = vmatprep.subr.mxu0 %v439
    %519 = vmatpush1.msra.mxu0 %v438
    %520 = vmatprep.subr.mxu0 %v435
    %521 = vmatpush1.msra.mxu0 %v434
    %522 = vmatprep.subr.mxu0 %v431
    %523 = vmatpush1.msra.mxu0 %v430
    %524 = vmatprep.subr.mxu0 %v427
    %525 = vmatpush1.msra.mxu0 %v426
    %526 = vmatprep.subr.mxu0 %v423
    %527 = vmatpush1.msra.mxu0 %v422
    %528 = vmatprep.subr.mxu0 %v419
    %529 = vmatpush1.msra.mxu0 %v418
    %530 = vmatprep.subr.mxu0 %v415
    %531 = vmatpush1.msra.mxu0 %v414
    %532 = vmatprep.subr.mxu0 %v411
    %533 = vmatpush1.msra.mxu0 %v410
    %534 = vmatprep.subr.mxu0 %v407
    %535 = vmatpush1.msra.mxu0 %v406
    %536 = vmatprep.subr.mxu0 %v403
    %537 = vmatpush1.msra.mxu0 %v402
    %538 = vmatprep.subr.mxu0 %v399
    %539 = vmatpush1.msra.mxu0 %v398
    %540 = vmatprep.subr.mxu0 %v395
    %541 = vmatpush1.msra.mxu0 %v394
    %542 = vmatprep.subr.mxu0 %v391
    %543 = vmatpush1.msra.mxu0 %v390
    %544 = vmatprep.subr.mxu0 %v387
    %545 = vmatpush1.msra.mxu0 %v386
    %546 = vmatprep.subr.mxu0 %v383
    %547 = vmatpush1.msra.mxu0 %v382
    %548 = vmatprep.subr.mxu0 0.0
    %549 = vmatpush2.msra.mxu0 0.0
    %550 = vmatprep.subr.mxu0 0.0
    %551 = vmatpush2.msra.mxu0 0.0
    %552 = vmatprep.subr.mxu0 0.0
    %553 = vmatpush2.msra.mxu0 0.0
    %554 = vmatprep.subr.mxu0 0.0
    %555 = vmatpush2.msra.mxu0 0.0
    %556 = vmatprep.subr.mxu0 0.0
    %557 = vmatpush2.msra.mxu0 0.0
    %558 = vmatprep.subr.mxu0 0.0
    %559 = vmatpush2.msra.mxu0 0.0
    %560 = vmatprep.subr.mxu0 0.0
    %561 = vmatpush2.msra.mxu0 0.0
    %562 = vmatprep.subr.mxu0 0.0
    %563 = vmatpush2.msra.mxu0 0.0
    %564 = vmatprep.subr.mxu0 0.0
    %565 = vmatpush2.msra.mxu0 0.0
    %566 = vmatprep.subr.mxu0 0.0
    %567 = vmatpush2.msra.mxu0 0.0
    %568 = vmatprep.subr.mxu0 0.0
    %569 = vmatpush2.msra.mxu0 0.0
    %570 = vmatprep.subr.mxu0 0.0
    %571 = vmatpush2.msra.mxu0 0.0
    %572 = vmatprep.subr.mxu0 0.0
    %573 = vmatpush2.msra.mxu0 0.0
    %574 = vmatprep.subr.mxu0 0.0
    %575 = vmatpush2.msra.mxu0 0.0
    %576 = vmatprep.subr.mxu0 0.0
    %577 = vmatpush2.msra.mxu0 0.0
    %578 = vmatprep.subr.mxu0 0.0
    %579 = vmatpush2.msra.mxu0 0.0
    %580 = vmatprep.mubr.f32.mxu0 0.0
    %581 = vmatmul.mubr.f32.gmra.mxu0 0.0
    %v582 = vpop.f32.mrf.mxu0
    %v583 = vadd.f32 0.0, %v582
    %v584 = vpop.f32.mrf.mxu0
    %v585 = vadd.f32 0.0, %v584
    %586 = vdwg.mxu0
    %v591 = vcombine.low %v512, %v514
    %v592 = vcombine.low %v583, %v585
    %v594 = vunpack.c.l.s4 1983009808
    %v595 = vunpack.c.0.s8 %v594
    %v596 = vlaneseq
    %v597 = vshrl.u32 %v596, 7
    %v598 = vsub.s32 %v595, %v597
    %v599 = vrot.slane %v591, %v598
    %v601 = vunpack.c.l.s4 1983009808
    %v602 = vunpack.c.0.s8 %v601
    %v603 = vlaneseq
    %v604 = vshrl.u32 %v603, 7
    %v605 = vsub.s32 %v602, %v604
    %v606 = vrot.slane %v592, %v605
    %v607 = vcombine.low %v599, %v606
    %v609 = vadd.f32 %v444, %v607
    %v610 = vxor.u32 %v609, 2147483648
    %v611 = vmul.f32 %v610, 1.442695
    %v612 = vpow.pop %v611
    %v613 = vadd.f32 %v612, 1.0
    %v614 = vrcp.pop %v613
    %v615 = vmul.f32 1.0, %v614
    %v617 = vrot.slane %v609, 2
    %v619 = vxor.u32 %v617, 2147483648
    %v620 = vmul.f32 %v619, 1.442695
    %v621 = vpow.pop %v620
    %v622 = vadd.f32 %v621, 1.0
    %v623 = vrcp.pop %v622
    %v624 = vmul.f32 1.0, %v623
    %v625 = vrot.slane %v609, 4
    %v627 = vtanh.pop %v625
    %v628 = vrot.slane %v609, 6
    %v630 = vxor.u32 %v628, 2147483648
    %v631 = vmul.f32 %v630, 1.442695
    %v632 = vpow.pop %v631
    %v633 = vadd.f32 %v632, 1.0
    %v634 = vrcp.pop %v633
    %v635 = vmul.f32 1.0, %v634
    %v636 = vmul.f32 %v624, 0.0
    %v637 = vmul.f32 %v615, %v627
    %v638 = vadd.f32 %v636, %v637
    %v639 = vtanh.pop %v638
    %v640 = vmul.f32 %v635, %v639
    %641 = vst [vmem:[#allocation3] sm:$0x3] %v640
    %s642 = scalar_lea.vmem [#allocation2], 8
    %v643 = vld [vmem:[%s642] sm:$0xff]
    %644 = vmatprep.subr.mxu0 %v441
    %645 = vmatpush1.msra.mxu0 %v440
    %646 = vmatprep.subr.mxu0 %v437
    %647 = vmatpush1.msra.mxu0 %v436
    %648 = vmatprep.subr.mxu0 %v433
    %649 = vmatpush1.msra.mxu0 %v432
    %650 = vmatprep.subr.mxu0 %v429
    %651 = vmatpush1.msra.mxu0 %v428
    %652 = vmatprep.subr.mxu0 %v425
    %653 = vmatpush1.msra.mxu0 %v424
    %654 = vmatprep.subr.mxu0 %v421
    %655 = vmatpush1.msra.mxu0 %v420
    %656 = vmatprep.subr.mxu0 %v417
    %657 = vmatpush1.msra.mxu0 %v416
    %658 = vmatprep.subr.mxu0 %v413
    %659 = vmatpush1.msra.mxu0 %v412
    %660 = vmatprep.subr.mxu0 %v409
    %661 = vmatpush1.msra.mxu0 %v408
    %662 = vmatprep.subr.mxu0 %v405
    %663 = vmatpush1.msra.mxu0 %v404
    %664 = vmatprep.subr.mxu0 %v401
    %665 = vmatpush1.msra.mxu0 %v400
    %666 = vmatprep.subr.mxu0 %v397
    %667 = vmatpush1.msra.mxu0 %v396
    %668 = vmatprep.subr.mxu0 %v393
    %669 = vmatpush1.msra.mxu0 %v392
    %670 = vmatprep.subr.mxu0 %v389
    %671 = vmatpush1.msra.mxu0 %v388
    %672 = vmatprep.subr.mxu0 %v385
    %673 = vmatpush1.msra.mxu0 %v384
    %674 = vmatprep.subr.mxu0 %v381
    %675 = vmatpush1.msra.mxu0 %v380
    %676 = vmatprep.subr.mxu0 0.0
    %677 = vmatpush2.msra.mxu0 0.0
    %678 = vmatprep.subr.mxu0 0.0
    %679 = vmatpush2.msra.mxu0 0.0
    %680 = vmatprep.subr.mxu0 0.0
    %681 = vmatpush2.msra.mxu0 0.0
    %682 = vmatprep.subr.mxu0 0.0
    %683 = vmatpush2.msra.mxu0 0.0
    %684 = vmatprep.subr.mxu0 0.0
    %685 = vmatpush2.msra.mxu0 0.0
    %686 = vmatprep.subr.mxu0 0.0
    %687 = vmatpush2.msra.mxu0 0.0
    %688 = vmatprep.subr.mxu0 0.0
    %689 = vmatpush2.msra.mxu0 0.0
    %690 = vmatprep.subr.mxu0 0.0
    %691 = vmatpush2.msra.mxu0 0.0
    %692 = vmatprep.subr.mxu0 0.0
    %693 = vmatpush2.msra.mxu0 0.0
    %694 = vmatprep.subr.mxu0 0.0
    %695 = vmatpush2.msra.mxu0 0.0
    %696 = vmatprep.subr.mxu0 0.0
    %697 = vmatpush2.msra.mxu0 0.0
    %698 = vmatprep.subr.mxu0 0.0
    %699 = vmatpush2.msra.mxu0 0.0
    %700 = vmatprep.subr.mxu0 0.0
    %701 = vmatpush2.msra.mxu0 0.0
    %702 = vmatprep.subr.mxu0 0.0
    %703 = vmatpush2.msra.mxu0 0.0
    %704 = vmatprep.subr.mxu0 0.0
    %705 = vmatpush2.msra.mxu0 0.0
    %706 = vmatprep.subr.mxu0 0.0
    %707 = vmatpush2.msra.mxu0 0.0
    %708 = vmatprep.mubr.f32.mxu0 0.0
    %709 = vmatmul.mubr.f32.gmra.mxu0 %v640
    %v710 = vpop.f32.mrf.mxu0
    %v711 = vadd.f32 0.0, %v710
    %v712 = vpop.f32.mrf.mxu0
    %v713 = vadd.f32 0.0, %v712
    %714 = vdwg.mxu0
    %715 = vmatprep.subr.mxu0 %v443
    %716 = vmatpush1.msra.mxu0 %v442
    %717 = vmatprep.subr.mxu0 %v439
    %718 = vmatpush1.msra.mxu0 %v438
    %719 = vmatprep.subr.mxu0 %v435
    %720 = vmatpush1.msra.mxu0 %v434
    %721 = vmatprep.subr.mxu0 %v431
    %722 = vmatpush1.msra.mxu0 %v430
    %723 = vmatprep.subr.mxu0 %v427
    %724 = vmatpush1.msra.mxu0 %v426
    %725 = vmatprep.subr.mxu0 %v423
    %726 = vmatpush1.msra.mxu0 %v422
    %727 = vmatprep.subr.mxu0 %v419
    %728 = vmatpush1.msra.mxu0 %v418
    %729 = vmatprep.subr.mxu0 %v415
    %730 = vmatpush1.msra.mxu0 %v414
    %731 = vmatprep.subr.mxu0 %v411
    %732 = vmatpush1.msra.mxu0 %v410
    %733 = vmatprep.subr.mxu0 %v407
    %734 = vmatpush1.msra.mxu0 %v406
    %735 = vmatprep.subr.mxu0 %v403
    %736 = vmatpush1.msra.mxu0 %v402
    %737 = vmatprep.subr.mxu0 %v399
    %738 = vmatpush1.msra.mxu0 %v398
    %739 = vmatprep.subr.mxu0 %v395
    %740 = vmatpush1.msra.mxu0 %v394
    %741 = vmatprep.subr.mxu0 %v391
    %742 = vmatpush1.msra.mxu0 %v390
    %743 = vmatprep.subr.mxu0 %v387
    %744 = vmatpush1.msra.mxu0 %v386
    %745 = vmatprep.subr.mxu0 %v383
    %746 = vmatpush1.msra.mxu0 %v382
    %747 = vmatprep.subr.mxu0 0.0
    %748 = vmatpush2.msra.mxu0 0.0
    %749 = vmatprep.subr.mxu0 0.0
    %750 = vmatpush2.msra.mxu0 0.0
    %751 = vmatprep.subr.mxu0 0.0
    %752 = vmatpush2.msra.mxu0 0.0
    %753 = vmatprep.subr.mxu0 0.0
    %754 = vmatpush2.msra.mxu0 0.0
    %755 = vmatprep.subr.mxu0 0.0
    %756 = vmatpush2.msra.mxu0 0.0
    %757 = vmatprep.subr.mxu0 0.0
    %758 = vmatpush2.msra.mxu0 0.0
    %759 = vmatprep.subr.mxu0 0.0
    %760 = vmatpush2.msra.mxu0 0.0
    %761 = vmatprep.subr.mxu0 0.0
    %762 = vmatpush2.msra.mxu0 0.0
    %763 = vmatprep.subr.mxu0 0.0
    %764 = vmatpush2.msra.mxu0 0.0
    %765 = vmatprep.subr.mxu0 0.0
    %766 = vmatpush2.msra.mxu0 0.0
    %767 = vmatprep.subr.mxu0 0.0
    %768 = vmatpush2.msra.mxu0 0.0
    %769 = vmatprep.subr.mxu0 0.0
    %770 = vmatpush2.msra.mxu0 0.0
    %771 = vmatprep.subr.mxu0 0.0
    %772 = vmatpush2.msra.mxu0 0.0
    %773 = vmatprep.subr.mxu0 0.0
    %774 = vmatpush2.msra.mxu0 0.0
    %775 = vmatprep.subr.mxu0 0.0
    %776 = vmatpush2.msra.mxu0 0.0
    %777 = vmatprep.subr.mxu0 0.0
    %778 = vmatpush2.msra.mxu0 0.0
    %779 = vmatprep.mubr.f32.mxu0 0.0
    %780 = vmatmul.mubr.f32.gmra.mxu0 %v640
    %v781 = vpop.f32.mrf.mxu0
    %v782 = vadd.f32 0.0, %v781
    %v783 = vpop.f32.mrf.mxu0
    %v784 = vadd.f32 0.0, %v783
    %785 = vdwg.mxu0
    %v790 = vcombine.low %v711, %v713
    %v791 = vcombine.low %v782, %v784
    %v793 = vunpack.c.l.s4 1983009808
    %v794 = vunpack.c.0.s8 %v793
    %v795 = vlaneseq
    %v796 = vshrl.u32 %v795, 7
    %v797 = vsub.s32 %v794, %v796
    %v798 = vrot.slane %v790, %v797
    %v800 = vunpack.c.l.s4 1983009808
    %v801 = vunpack.c.0.s8 %v800
    %v802 = vlaneseq
    %v803 = vshrl.u32 %v802, 7
    %v804 = vsub.s32 %v801, %v803
    %v805 = vrot.slane %v791, %v804
    %v806 = vcombine.low %v798, %v805
    %v808 = vadd.f32 %v643, %v806
    %v809 = vxor.u32 %v808, 2147483648
    %v810 = vmul.f32 %v809, 1.442695
    %v811 = vpow.pop %v810
    %v812 = vadd.f32 %v811, 1.0
    %v813 = vrcp.pop %v812
    %v814 = vmul.f32 1.0, %v813
    %v816 = vrot.slane %v808, 2
    %v818 = vxor.u32 %v816, 2147483648
    %v819 = vmul.f32 %v818, 1.442695
    %v820 = vpow.pop %v819
    %v821 = vadd.f32 %v820, 1.0
    %v822 = vrcp.pop %v821
    %v823 = vmul.f32 1.0, %v822
    %v824 = vrot.slane %v808, 4
    %v826 = vtanh.pop %v824
    %v827 = vrot.slane %v808, 6
    %v829 = vxor.u32 %v827, 2147483648
    %v830 = vmul.f32 %v829, 1.442695
    %v831 = vpow.pop %v830
    %v832 = vadd.f32 %v831, 1.0
    %v833 = vrcp.pop %v832
    %v834 = vmul.f32 1.0, %v833
    %v835 = vmul.f32 %v823, %v638
    %v836 = vmul.f32 %v814, %v826
    %v837 = vadd.f32 %v835, %v836
    %v838 = vtanh.pop %v837
    %v839 = vmul.f32 %v834, %v838
    %s840 = scalar_lea.vmem [#allocation3], 2
    %841 = vst [vmem:[%s840] sm:$0x3] %v839
    %s842 = scalar_lea.vmem [#allocation2], 16
    %v843 = vld [vmem:[%s842] sm:$0xff]
    %844 = vmatprep.subr.mxu0 %v441
    %845 = vmatpush1.msra.mxu0 %v440
    %846 = vmatprep.subr.mxu0 %v437
    %847 = vmatpush1.msra.mxu0 %v436
    %848 = vmatprep.subr.mxu0 %v433
    %849 = vmatpush1.msra.mxu0 %v432
    %850 = vmatprep.subr.mxu0 %v429
    %851 = vmatpush1.msra.mxu0 %v428
    %852 = vmatprep.subr.mxu0 %v425
    %853 = vmatpush1.msra.mxu0 %v424
    %854 = vmatprep.subr.mxu0 %v421
    %855 = vmatpush1.msra.mxu0 %v420
    %856 = vmatprep.subr.mxu0 %v417
    %857 = vmatpush1.msra.mxu0 %v416
    %858 = vmatprep.subr.mxu0 %v413
    %859 = vmatpush1.msra.mxu0 %v412
    %860 = vmatprep.subr.mxu0 %v409
    %861 = vmatpush1.msra.mxu0 %v408
    %862 = vmatprep.subr.mxu0 %v405
    %863 = vmatpush1.msra.mxu0 %v404
    %864 = vmatprep.subr.mxu0 %v401
    %865 = vmatpush1.msra.mxu0 %v400
    %866 = vmatprep.subr.mxu0 %v397
    %867 = vmatpush1.msra.mxu0 %v396
    %868 = vmatprep.subr.mxu0 %v393
    %869 = vmatpush1.msra.mxu0 %v392
    %870 = vmatprep.subr.mxu0 %v389
    %871 = vmatpush1.msra.mxu0 %v388
    %872 = vmatprep.subr.mxu0 %v385
    %873 = vmatpush1.msra.mxu0 %v384
    %874 = vmatprep.subr.mxu0 %v381
    %875 = vmatpush1.msra.mxu0 %v380
    %876 = vmatprep.subr.mxu0 0.0
    %877 = vmatpush2.msra.mxu0 0.0
    %878 = vmatprep.subr.mxu0 0.0
    %879 = vmatpush2.msra.mxu0 0.0
    %880 = vmatprep.subr.mxu0 0.0
    %881 = vmatpush2.msra.mxu0 0.0
    %882 = vmatprep.subr.mxu0 0.0
    %883 = vmatpush2.msra.mxu0 0.0
    %884 = vmatprep.subr.mxu0 0.0
    %885 = vmatpush2.msra.mxu0 0.0
    %886 = vmatprep.subr.mxu0 0.0
    %887 = vmatpush2.msra.mxu0 0.0
    %888 = vmatprep.subr.mxu0 0.0
    %889 = vmatpush2.msra.mxu0 0.0
    %890 = vmatprep.subr.mxu0 0.0
    %891 = vmatpush2.msra.mxu0 0.0
    %892 = vmatprep.subr.mxu0 0.0
    %893 = vmatpush2.msra.mxu0 0.0
    %894 = vmatprep.subr.mxu0 0.0
    %895 = vmatpush2.msra.mxu0 0.0
    %896 = vmatprep.subr.mxu0 0.0
    %897 = vmatpush2.msra.mxu0 0.0
    %898 = vmatprep.subr.mxu0 0.0
    %899 = vmatpush2.msra.mxu0 0.0
    %900 = vmatprep.subr.mxu0 0.0
    %901 = vmatpush2.msra.mxu0 0.0
    %902 = vmatprep.subr.mxu0 0.0
    %903 = vmatpush2.msra.mxu0 0.0
    %904 = vmatprep.subr.mxu0 0.0
    %905 = vmatpush2.msra.mxu0 0.0
    %906 = vmatprep.subr.mxu0 0.0
    %907 = vmatpush2.msra.mxu0 0.0
    %908 = vmatprep.mubr.f32.mxu0 0.0
    %909 = vmatmul.mubr.f32.gmra.mxu0 %v839
    %v910 = vpop.f32.mrf.mxu0
    %v911 = vadd.f32 0.0, %v910
    %v912 = vpop.f32.mrf.mxu0
    %v913 = vadd.f32 0.0, %v912
    %914 = vdwg.mxu0
    %915 = vmatprep.subr.mxu0 %v443
    %916 = vmatpush1.msra.mxu0 %v442
    %917 = vmatprep.subr.mxu0 %v439
    %918 = vmatpush1.msra.mxu0 %v438
    %919 = vmatprep.subr.mxu0 %v435
    %920 = vmatpush1.msra.mxu0 %v434
    %921 = vmatprep.subr.mxu0 %v431
    %922 = vmatpush1.msra.mxu0 %v430
    %923 = vmatprep.subr.mxu0 %v427
    %924 = vmatpush1.msra.mxu0 %v426
    %925 = vmatprep.subr.mxu0 %v423
    %926 = vmatpush1.msra.mxu0 %v422
    %927 = vmatprep.subr.mxu0 %v419
    %928 = vmatpush1.msra.mxu0 %v418
    %929 = vmatprep.subr.mxu0 %v415
    %930 = vmatpush1.msra.mxu0 %v414
    %931 = vmatprep.subr.mxu0 %v411
    %932 = vmatpush1.msra.mxu0 %v410
    %933 = vmatprep.subr.mxu0 %v407
    %934 = vmatpush1.msra.mxu0 %v406
    %935 = vmatprep.subr.mxu0 %v403
    %936 = vmatpush1.msra.mxu0 %v402
    %937 = vmatprep.subr.mxu0 %v399
    %938 = vmatpush1.msra.mxu0 %v398
    %939 = vmatprep.subr.mxu0 %v395
    %940 = vmatpush1.msra.mxu0 %v394
    %941 = vmatprep.subr.mxu0 %v391
    %942 = vmatpush1.msra.mxu0 %v390
    %943 = vmatprep.subr.mxu0 %v387
    %944 = vmatpush1.msra.mxu0 %v386
    %945 = vmatprep.subr.mxu0 %v383
    %946 = vmatpush1.msra.mxu0 %v382
    %947 = vmatprep.subr.mxu0 0.0
    %948 = vmatpush2.msra.mxu0 0.0
    %949 = vmatprep.subr.mxu0 0.0
    %950 = vmatpush2.msra.mxu0 0.0
    %951 = vmatprep.subr.mxu0 0.0
    %952 = vmatpush2.msra.mxu0 0.0
    %953 = vmatprep.subr.mxu0 0.0
    %954 = vmatpush2.msra.mxu0 0.0
    %955 = vmatprep.subr.mxu0 0.0
    %956 = vmatpush2.msra.mxu0 0.0
    %957 = vmatprep.subr.mxu0 0.0
    %958 = vmatpush2.msra.mxu0 0.0
    %959 = vmatprep.subr.mxu0 0.0
    %960 = vmatpush2.msra.mxu0 0.0
    %961 = vmatprep.subr.mxu0 0.0
    %962 = vmatpush2.msra.mxu0 0.0
    %963 = vmatprep.subr.mxu0 0.0
    %964 = vmatpush2.msra.mxu0 0.0
    %965 = vmatprep.subr.mxu0 0.0
    %966 = vmatpush2.msra.mxu0 0.0
    %967 = vmatprep.subr.mxu0 0.0
    %968 = vmatpush2.msra.mxu0 0.0
    %969 = vmatprep.subr.mxu0 0.0
    %970 = vmatpush2.msra.mxu0 0.0
    %971 = vmatprep.subr.mxu0 0.0
    %972 = vmatpush2.msra.mxu0 0.0
    %973 = vmatprep.subr.mxu0 0.0
    %974 = vmatpush2.msra.mxu0 0.0
    %975 = vmatprep.subr.mxu0 0.0
    %976 = vmatpush2.msra.mxu0 0.0
    %977 = vmatprep.subr.mxu0 0.0
    %978 = vmatpush2.msra.mxu0 0.0
    %979 = vmatprep.mubr.f32.mxu0 0.0
    %980 = vmatmul.mubr.f32.gmra.mxu0 %v839
    %v981 = vpop.f32.mrf.mxu0
    %v982 = vadd.f32 0.0, %v981
    %v983 = vpop.f32.mrf.mxu0
    %v984 = vadd.f32 0.0, %v983
    %985 = vdwg.mxu0
    %v990 = vcombine.low %v911, %v913
    %v991 = vcombine.low %v982, %v984
    %v993 = vunpack.c.l.s4 1983009808
    %v994 = vunpack.c.0.s8 %v993
    %v995 = vlaneseq
    %v996 = vshrl.u32 %v995, 7
    %v997 = vsub.s32 %v994, %v996
    %v998 = vrot.slane %v990, %v997
    %v1000 = vunpack.c.l.s4 1983009808
    %v1001 = vunpack.c.0.s8 %v1000
    %v1002 = vlaneseq
    %v1003 = vshrl.u32 %v1002, 7
    %v1004 = vsub.s32 %v1001, %v1003
    %v1005 = vrot.slane %v991, %v1004
    %v1006 = vcombine.low %v998, %v1005
    %v1008 = vadd.f32 %v843, %v1006
    %v1009 = vxor.u32 %v1008, 2147483648
    %v1010 = vmul.f32 %v1009, 1.442695
    %v1011 = vpow.pop %v1010
    %v1012 = vadd.f32 %v1011, 1.0
    %v1013 = vrcp.pop %v1012
    %v1014 = vmul.f32 1.0, %v1013
    %v1016 = vrot.slane %v1008, 2
    %v1018 = vxor.u32 %v1016, 2147483648
    %v1019 = vmul.f32 %v1018, 1.442695
    %v1020 = vpow.pop %v1019
    %v1021 = vadd.f32 %v1020, 1.0
    %v1022 = vrcp.pop %v1021
    %v1023 = vmul.f32 1.0, %v1022
    %v1024 = vrot.slane %v1008, 4
    %v1026 = vtanh.pop %v1024
    %v1027 = vrot.slane %v1008, 6
    %v1029 = vxor.u32 %v1027, 2147483648
    %v1030 = vmul.f32 %v1029, 1.442695
    %v1031 = vpow.pop %v1030
    %v1032 = vadd.f32 %v1031, 1.0
    %v1033 = vrcp.pop %v1032
    %v1034 = vmul.f32 1.0, %v1033
    %v1035 = vmul.f32 %v1023, %v837
    %v1036 = vmul.f32 %v1014, %v1026
    %v1037 = vadd.f32 %v1035, %v1036
    %v1038 = vtanh.pop %v1037
    %v1039 = vmul.f32 %v1034, %v1038
    %s1040 = scalar_lea.vmem [#allocation3], 4
    %1041 = vst [vmem:[%s1040] sm:$0x3] %v1039
    %s1042 = scalar_lea.vmem [#allocation2], 24
    %v1043 = vld [vmem:[%s1042] sm:$0xff]
    %1044 = vmatprep.subr.mxu0 %v441
    %1045 = vmatpush1.msra.mxu0 %v440
    %1046 = vmatprep.subr.mxu0 %v437
    %1047 = vmatpush1.msra.mxu0 %v436
    %1048 = vmatprep.subr.mxu0 %v433
    %1049 = vmatpush1.msra.mxu0 %v432
    %1050 = vmatprep.subr.mxu0 %v429
    %1051 = vmatpush1.msra.mxu0 %v428
    %1052 = vmatprep.subr.mxu0 %v425
    %1053 = vmatpush1.msra.mxu0 %v424
    %1054 = vmatprep.subr.mxu0 %v421
    %1055 = vmatpush1.msra.mxu0 %v420
    %1056 = vmatprep.subr.mxu0 %v417
    %1057 = vmatpush1.msra.mxu0 %v416
    %1058 = vmatprep.subr.mxu0 %v413
    %1059 = vmatpush1.msra.mxu0 %v412
    %1060 = vmatprep.subr.mxu0 %v409
    %1061 = vmatpush1.msra.mxu0 %v408
    %1062 = vmatprep.subr.mxu0 %v405
    %1063 = vmatpush1.msra.mxu0 %v404
    %1064 = vmatprep.subr.mxu0 %v401
    %1065 = vmatpush1.msra.mxu0 %v400
    %1066 = vmatprep.subr.mxu0 %v397
    %1067 = vmatpush1.msra.mxu0 %v396
    %1068 = vmatprep.subr.mxu0 %v393
    %1069 = vmatpush1.msra.mxu0 %v392
    %1070 = vmatprep.subr.mxu0 %v389
    %1071 = vmatpush1.msra.mxu0 %v388
    %1072 = vmatprep.subr.mxu0 %v385
    %1073 = vmatpush1.msra.mxu0 %v384
    %1074 = vmatprep.subr.mxu0 %v381
    %1075 = vmatpush1.msra.mxu0 %v380
    %1076 = vmatprep.subr.mxu0 0.0
    %1077 = vmatpush2.msra.mxu0 0.0
    %1078 = vmatprep.subr.mxu0 0.0
    %1079 = vmatpush2.msra.mxu0 0.0
    %1080 = vmatprep.subr.mxu0 0.0
    %1081 = vmatpush2.msra.mxu0 0.0
    %1082 = vmatprep.subr.mxu0 0.0
    %1083 = vmatpush2.msra.mxu0 0.0
    %1084 = vmatprep.subr.mxu0 0.0
    %1085 = vmatpush2.msra.mxu0 0.0
    %1086 = vmatprep.subr.mxu0 0.0
    %1087 = vmatpush2.msra.mxu0 0.0
    %1088 = vmatprep.subr.mxu0 0.0
    %1089 = vmatpush2.msra.mxu0 0.0
    %1090 = vmatprep.subr.mxu0 0.0
    %1091 = vmatpush2.msra.mxu0 0.0
    %1092 = vmatprep.subr.mxu0 0.0
    %1093 = vmatpush2.msra.mxu0 0.0
    %1094 = vmatprep.subr.mxu0 0.0
    %1095 = vmatpush2.msra.mxu0 0.0
    %1096 = vmatprep.subr.mxu0 0.0
    %1097 = vmatpush2.msra.mxu0 0.0
    %1098 = vmatprep.subr.mxu0 0.0
    %1099 = vmatpush2.msra.mxu0 0.0
    %1100 = vmatprep.subr.mxu0 0.0
    %1101 = vmatpush2.msra.mxu0 0.0
    %1102 = vmatprep.subr.mxu0 0.0
    %1103 = vmatpush2.msra.mxu0 0.0
    %1104 = vmatprep.subr.mxu0 0.0
    %1105 = vmatpush2.msra.mxu0 0.0
    %1106 = vmatprep.subr.mxu0 0.0
    %1107 = vmatpush2.msra.mxu0 0.0
    %1108 = vmatprep.mubr.f32.mxu0 0.0
    %1109 = vmatmul.mubr.f32.gmra.mxu0 %v1039
    %v1110 = vpop.f32.mrf.mxu0
    %v1111 = vadd.f32 0.0, %v1110
    %v1112 = vpop.f32.mrf.mxu0
    %v1113 = vadd.f32 0.0, %v1112
    %1114 = vdwg.mxu0
    %1115 = vmatprep.subr.mxu0 %v443
    %1116 = vmatpush1.msra.mxu0 %v442
    %1117 = vmatprep.subr.mxu0 %v439
    %1118 = vmatpush1.msra.mxu0 %v438
    %1119 = vmatprep.subr.mxu0 %v435
    %1120 = vmatpush1.msra.mxu0 %v434
    %1121 = vmatprep.subr.mxu0 %v431
    %1122 = vmatpush1.msra.mxu0 %v430
    %1123 = vmatprep.subr.mxu0 %v427
    %1124 = vmatpush1.msra.mxu0 %v426
    %1125 = vmatprep.subr.mxu0 %v423
    %1126 = vmatpush1.msra.mxu0 %v422
    %1127 = vmatprep.subr.mxu0 %v419
    %1128 = vmatpush1.msra.mxu0 %v418
    %1129 = vmatprep.subr.mxu0 %v415
    %1130 = vmatpush1.msra.mxu0 %v414
    %1131 = vmatprep.subr.mxu0 %v411
    %1132 = vmatpush1.msra.mxu0 %v410
    %1133 = vmatprep.subr.mxu0 %v407
    %1134 = vmatpush1.msra.mxu0 %v406
    %1135 = vmatprep.subr.mxu0 %v403
    %1136 = vmatpush1.msra.mxu0 %v402
    %1137 = vmatprep.subr.mxu0 %v399
    %1138 = vmatpush1.msra.mxu0 %v398
    %1139 = vmatprep.subr.mxu0 %v395
    %1140 = vmatpush1.msra.mxu0 %v394
    %1141 = vmatprep.subr.mxu0 %v391
    %1142 = vmatpush1.msra.mxu0 %v390
    %1143 = vmatprep.subr.mxu0 %v387
    %1144 = vmatpush1.msra.mxu0 %v386
    %1145 = vmatprep.subr.mxu0 %v383
    %1146 = vmatpush1.msra.mxu0 %v382
    %1147 = vmatprep.subr.mxu0 0.0
    %1148 = vmatpush2.msra.mxu0 0.0
    %1149 = vmatprep.subr.mxu0 0.0
    %1150 = vmatpush2.msra.mxu0 0.0
    %1151 = vmatprep.subr.mxu0 0.0
    %1152 = vmatpush2.msra.mxu0 0.0
    %1153 = vmatprep.subr.mxu0 0.0
    %1154 = vmatpush2.msra.mxu0 0.0
    %1155 = vmatprep.subr.mxu0 0.0
    %1156 = vmatpush2.msra.mxu0 0.0
    %1157 = vmatprep.subr.mxu0 0.0
    %1158 = vmatpush2.msra.mxu0 0.0
    %1159 = vmatprep.subr.mxu0 0.0
    %1160 = vmatpush2.msra.mxu0 0.0
    %1161 = vmatprep.subr.mxu0 0.0
    %1162 = vmatpush2.msra.mxu0 0.0
    %1163 = vmatprep.subr.mxu0 0.0
    %1164 = vmatpush2.msra.mxu0 0.0
    %1165 = vmatprep.subr.mxu0 0.0
    %1166 = vmatpush2.msra.mxu0 0.0
    %1167 = vmatprep.subr.mxu0 0.0
    %1168 = vmatpush2.msra.mxu0 0.0
    %1169 = vmatprep.subr.mxu0 0.0
    %1170 = vmatpush2.msra.mxu0 0.0
    %1171 = vmatprep.subr.mxu0 0.0
    %1172 = vmatpush2.msra.mxu0 0.0
    %1173 = vmatprep.subr.mxu0 0.0
    %1174 = vmatpush2.msra.mxu0 0.0
    %1175 = vmatprep.subr.mxu0 0.0
    %1176 = vmatpush2.msra.mxu0 0.0
    %1177 = vmatprep.subr.mxu0 0.0
    %1178 = vmatpush2.msra.mxu0 0.0
    %1179 = vmatprep.mubr.f32.mxu0 0.0
    %1180 = vmatmul.mubr.f32.gmra.mxu0 %v1039
    %v1181 = vpop.f32.mrf.mxu0
    %v1182 = vadd.f32 0.0, %v1181
    %v1183 = vpop.f32.mrf.mxu0
    %v1184 = vadd.f32 0.0, %v1183
    %1185 = vdwg.mxu0
    %v1190 = vcombine.low %v1111, %v1113
    %v1191 = vcombine.low %v1182, %v1184
    %v1193 = vunpack.c.l.s4 1983009808
    %v1194 = vunpack.c.0.s8 %v1193
    %v1195 = vlaneseq
    %v1196 = vshrl.u32 %v1195, 7
    %v1197 = vsub.s32 %v1194, %v1196
    %v1198 = vrot.slane %v1190, %v1197
    %v1200 = vunpack.c.l.s4 1983009808
    %v1201 = vunpack.c.0.s8 %v1200
    %v1202 = vlaneseq
    %v1203 = vshrl.u32 %v1202, 7
    %v1204 = vsub.s32 %v1201, %v1203
    %v1205 = vrot.slane %v1191, %v1204
    %v1206 = vcombine.low %v1198, %v1205
    %v1208 = vadd.f32 %v1043, %v1206
    %v1209 = vxor.u32 %v1208, 2147483648
    %v1210 = vmul.f32 %v1209, 1.442695
    %v1211 = vpow.pop %v1210
    %v1212 = vadd.f32 %v1211, 1.0
    %v1213 = vrcp.pop %v1212
    %v1214 = vmul.f32 1.0, %v1213
    %v1216 = vrot.slane %v1208, 2
    %v1218 = vxor.u32 %v1216, 2147483648
    %v1219 = vmul.f32 %v1218, 1.442695
    %v1220 = vpow.pop %v1219
    %v1221 = vadd.f32 %v1220, 1.0
    %v1222 = vrcp.pop %v1221
    %v1223 = vmul.f32 1.0, %v1222
    %v1224 = vrot.slane %v1208, 4
    %v1226 = vtanh.pop %v1224
    %v1227 = vrot.slane %v1208, 6
    %v1229 = vxor.u32 %v1227, 2147483648
    %v1230 = vmul.f32 %v1229, 1.442695
    %v1231 = vpow.pop %v1230
    %v1232 = vadd.f32 %v1231, 1.0
    %v1233 = vrcp.pop %v1232
    %v1234 = vmul.f32 1.0, %v1233
    %v1235 = vmul.f32 %v1223, %v1037
    %v1236 = vmul.f32 %v1214, %v1226
    %v1237 = vadd.f32 %v1235, %v1236
    %v1238 = vtanh.pop %v1237
    %v1239 = vmul.f32 %v1234, %v1238
    %s1240 = scalar_lea.vmem [#allocation3], 6
    %1241 = vst [vmem:[%s1240] sm:$0x3] %v1239
    %s1242 = scalar_lea.vmem [#allocation2], 32
    %v1243 = vld [vmem:[%s1242] sm:$0xff]
    %1244 = vmatprep.subr.mxu0 %v441
    %1245 = vmatpush1.msra.mxu0 %v440
    %1246 = vmatprep.subr.mxu0 %v437
    %1247 = vmatpush1.msra.mxu0 %v436
    %1248 = vmatprep.subr.mxu0 %v433
    %1249 = vmatpush1.msra.mxu0 %v432
    %1250 = vmatprep.subr.mxu0 %v429
    %1251 = vmatpush1.msra.mxu0 %v428
    %1252 = vmatprep.subr.mxu0 %v425
    %1253 = vmatpush1.msra.mxu0 %v424
    %1254 = vmatprep.subr.mxu0 %v421
    %1255 = vmatpush1.msra.mxu0 %v420
    %1256 = vmatprep.subr.mxu0 %v417
    %1257 = vmatpush1.msra.mxu0 %v416
    %1258 = vmatprep.subr.mxu0 %v413
    %1259 = vmatpush1.msra.mxu0 %v412
    %1260 = vmatprep.subr.mxu0 %v409
    %1261 = vmatpush1.msra.mxu0 %v408
    %1262 = vmatprep.subr.mxu0 %v405
    %1263 = vmatpush1.msra.mxu0 %v404
    %1264 = vmatprep.subr.mxu0 %v401
    %1265 = vmatpush1.msra.mxu0 %v400
    %1266 = vmatprep.subr.mxu0 %v397
    %1267 = vmatpush1.msra.mxu0 %v396
    %1268 = vmatprep.subr.mxu0 %v393
    %1269 = vmatpush1.msra.mxu0 %v392
    %1270 = vmatprep.subr.mxu0 %v389
    %1271 = vmatpush1.msra.mxu0 %v388
    %1272 = vmatprep.subr.mxu0 %v385
    %1273 = vmatpush1.msra.mxu0 %v384
    %1274 = vmatprep.subr.mxu0 %v381
    %1275 = vmatpush1.msra.mxu0 %v380
    %1276 = vmatprep.subr.mxu0 0.0
    %1277 = vmatpush2.msra.mxu0 0.0
    %1278 = vmatprep.subr.mxu0 0.0
    %1279 = vmatpush2.msra.mxu0 0.0
    %1280 = vmatprep.subr.mxu0 0.0
    %1281 = vmatpush2.msra.mxu0 0.0
    %1282 = vmatprep.subr.mxu0 0.0
    %1283 = vmatpush2.msra.mxu0 0.0
    %1284 = vmatprep.subr.mxu0 0.0
    %1285 = vmatpush2.msra.mxu0 0.0
    %1286 = vmatprep.subr.mxu0 0.0
    %1287 = vmatpush2.msra.mxu0 0.0
    %1288 = vmatprep.subr.mxu0 0.0
    %1289 = vmatpush2.msra.mxu0 0.0
    %1290 = vmatprep.subr.mxu0 0.0
    %1291 = vmatpush2.msra.mxu0 0.0
    %1292 = vmatprep.subr.mxu0 0.0
    %1293 = vmatpush2.msra.mxu0 0.0
    %1294 = vmatprep.subr.mxu0 0.0
    %1295 = vmatpush2.msra.mxu0 0.0
    %1296 = vmatprep.subr.mxu0 0.0
    %1297 = vmatpush2.msra.mxu0 0.0
    %1298 = vmatprep.subr.mxu0 0.0
    %1299 = vmatpush2.msra.mxu0 0.0
    %1300 = vmatprep.subr.mxu0 0.0
    %1301 = vmatpush2.msra.mxu0 0.0
    %1302 = vmatprep.subr.mxu0 0.0
    %1303 = vmatpush2.msra.mxu0 0.0
    %1304 = vmatprep.subr.mxu0 0.0
    %1305 = vmatpush2.msra.mxu0 0.0
    %1306 = vmatprep.subr.mxu0 0.0
    %1307 = vmatpush2.msra.mxu0 0.0
    %1308 = vmatprep.mubr.f32.mxu0 0.0
    %1309 = vmatmul.mubr.f32.gmra.mxu0 %v1239
    %v1310 = vpop.f32.mrf.mxu0
    %v1311 = vadd.f32 0.0, %v1310
    %v1312 = vpop.f32.mrf.mxu0
    %v1313 = vadd.f32 0.0, %v1312
    %1314 = vdwg.mxu0
    %1315 = vmatprep.subr.mxu0 %v443
    %1316 = vmatpush1.msra.mxu0 %v442
    %1317 = vmatprep.subr.mxu0 %v439
    %1318 = vmatpush1.msra.mxu0 %v438
    %1319 = vmatprep.subr.mxu0 %v435
    %1320 = vmatpush1.msra.mxu0 %v434
    %1321 = vmatprep.subr.mxu0 %v431
    %1322 = vmatpush1.msra.mxu0 %v430
    %1323 = vmatprep.subr.mxu0 %v427
    %1324 = vmatpush1.msra.mxu0 %v426
    %1325 = vmatprep.subr.mxu0 %v423
    %1326 = vmatpush1.msra.mxu0 %v422
    %1327 = vmatprep.subr.mxu0 %v419
    %1328 = vmatpush1.msra.mxu0 %v418
    %1329 = vmatprep.subr.mxu0 %v415
    %1330 = vmatpush1.msra.mxu0 %v414
    %1331 = vmatprep.subr.mxu0 %v411
    %1332 = vmatpush1.msra.mxu0 %v410
    %1333 = vmatprep.subr.mxu0 %v407
    %1334 = vmatpush1.msra.mxu0 %v406
    %1335 = vmatprep.subr.mxu0 %v403
    %1336 = vmatpush1.msra.mxu0 %v402
    %1337 = vmatprep.subr.mxu0 %v399
    %1338 = vmatpush1.msra.mxu0 %v398
    %1339 = vmatprep.subr.mxu0 %v395
    %1340 = vmatpush1.msra.mxu0 %v394
    %1341 = vmatprep.subr.mxu0 %v391
    %1342 = vmatpush1.msra.mxu0 %v390
    %1343 = vmatprep.subr.mxu0 %v387
    %1344 = vmatpush1.msra.mxu0 %v386
    %1345 = vmatprep.subr.mxu0 %v383
    %1346 = vmatpush1.msra.mxu0 %v382
    %1347 = vmatprep.subr.mxu0 0.0
    %1348 = vmatpush2.msra.mxu0 0.0
    %1349 = vmatprep.subr.mxu0 0.0
    %1350 = vmatpush2.msra.mxu0 0.0
    %1351 = vmatprep.subr.mxu0 0.0
    %1352 = vmatpush2.msra.mxu0 0.0
    %1353 = vmatprep.subr.mxu0 0.0
    %1354 = vmatpush2.msra.mxu0 0.0
    %1355 = vmatprep.subr.mxu0 0.0
    %1356 = vmatpush2.msra.mxu0 0.0
    %1357 = vmatprep.subr.mxu0 0.0
    %1358 = vmatpush2.msra.mxu0 0.0
    %1359 = vmatprep.subr.mxu0 0.0
    %1360 = vmatpush2.msra.mxu0 0.0
    %1361 = vmatprep.subr.mxu0 0.0
    %1362 = vmatpush2.msra.mxu0 0.0
    %1363 = vmatprep.subr.mxu0 0.0
    %1364 = vmatpush2.msra.mxu0 0.0
    %1365 = vmatprep.subr.mxu0 0.0
    %1366 = vmatpush2.msra.mxu0 0.0
    %1367 = vmatprep.subr.mxu0 0.0
    %1368 = vmatpush2.msra.mxu0 0.0
    %1369 = vmatprep.subr.mxu0 0.0
    %1370 = vmatpush2.msra.mxu0 0.0
    %1371 = vmatprep.subr.mxu0 0.0
    %1372 = vmatpush2.msra.mxu0 0.0
    %1373 = vmatprep.subr.mxu0 0.0
    %1374 = vmatpush2.msra.mxu0 0.0
    %1375 = vmatprep.subr.mxu0 0.0
    %1376 = vmatpush2.msra.mxu0 0.0
    %1377 = vmatprep.subr.mxu0 0.0
    %1378 = vmatpush2.msra.mxu0 0.0
    %1379 = vmatprep.mubr.f32.mxu0 0.0
    %1380 = vmatmul.mubr.f32.gmra.mxu0 %v1239
    %v1381 = vpop.f32.mrf.mxu0
    %v1382 = vadd.f32 0.0, %v1381
    %v1383 = vpop.f32.mrf.mxu0
    %v1384 = vadd.f32 0.0, %v1383
    %1385 = vdwg.mxu0
    %v1390 = vcombine.low %v1311, %v1313
    %v1391 = vcombine.low %v1382, %v1384
    %v1393 = vunpack.c.l.s4 1983009808
    %v1394 = vunpack.c.0.s8 %v1393
    %v1395 = vlaneseq
    %v1396 = vshrl.u32 %v1395, 7
    %v1397 = vsub.s32 %v1394, %v1396
    %v1398 = vrot.slane %v1390, %v1397
    %v1400 = vunpack.c.l.s4 1983009808
    %v1401 = vunpack.c.0.s8 %v1400
    %v1402 = vlaneseq
    %v1403 = vshrl.u32 %v1402, 7
    %v1404 = vsub.s32 %v1401, %v1403
    %v1405 = vrot.slane %v1391, %v1404
    %v1406 = vcombine.low %v1398, %v1405
    %v1408 = vadd.f32 %v1243, %v1406
    %v1409 = vxor.u32 %v1408, 2147483648
    %v1410 = vmul.f32 %v1409, 1.442695
    %v1411 = vpow.pop %v1410
    %v1412 = vadd.f32 %v1411, 1.0
    %v1413 = vrcp.pop %v1412
    %v1414 = vmul.f32 1.0, %v1413
    %v1416 = vrot.slane %v1408, 2
    %v1418 = vxor.u32 %v1416, 2147483648
    %v1419 = vmul.f32 %v1418, 1.442695
    %v1420 = vpow.pop %v1419
    %v1421 = vadd.f32 %v1420, 1.0
    %v1422 = vrcp.pop %v1421
    %v1423 = vmul.f32 1.0, %v1422
    %v1424 = vrot.slane %v1408, 4
    %v1426 = vtanh.pop %v1424
    %v1427 = vrot.slane %v1408, 6
    %v1429 = vxor.u32 %v1427, 2147483648
    %v1430 = vmul.f32 %v1429, 1.442695
    %v1431 = vpow.pop %v1430
    %v1432 = vadd.f32 %v1431, 1.0
    %v1433 = vrcp.pop %v1432
    %v1434 = vmul.f32 1.0, %v1433
    %v1435 = vmul.f32 %v1423, %v1237
    %v1436 = vmul.f32 %v1414, %v1426
    %v1437 = vadd.f32 %v1435, %v1436
    %v1438 = vtanh.pop %v1437
    %v1439 = vmul.f32 %v1434, %v1438
    %s1440 = scalar_lea.vmem [#allocation3], 8
    %1441 = vst [vmem:[%s1440] sm:$0x3] %v1439
    %s1442 = scalar_lea.vmem [#allocation2], 40
    %v1443 = vld [vmem:[%s1442] sm:$0xff]
    %1444 = vmatprep.subr.mxu0 %v441
    %1445 = vmatpush1.msra.mxu0 %v440
    %1446 = vmatprep.subr.mxu0 %v437
    %1447 = vmatpush1.msra.mxu0 %v436
    %1448 = vmatprep.subr.mxu0 %v433
    %1449 = vmatpush1.msra.mxu0 %v432
    %1450 = vmatprep.subr.mxu0 %v429
    %1451 = vmatpush1.msra.mxu0 %v428
    %1452 = vmatprep.subr.mxu0 %v425
    %1453 = vmatpush1.msra.mxu0 %v424
    %1454 = vmatprep.subr.mxu0 %v421
    %1455 = vmatpush1.msra.mxu0 %v420
    %1456 = vmatprep.subr.mxu0 %v417
    %1457 = vmatpush1.msra.mxu0 %v416
    %1458 = vmatprep.subr.mxu0 %v413
    %1459 = vmatpush1.msra.mxu0 %v412
    %1460 = vmatprep.subr.mxu0 %v409
    %1461 = vmatpush1.msra.mxu0 %v408
    %1462 = vmatprep.subr.mxu0 %v405
    %1463 = vmatpush1.msra.mxu0 %v404
    %1464 = vmatprep.subr.mxu0 %v401
    %1465 = vmatpush1.msra.mxu0 %v400
    %1466 = vmatprep.subr.mxu0 %v397
    %1467 = vmatpush1.msra.mxu0 %v396
    %1468 = vmatprep.subr.mxu0 %v393
    %1469 = vmatpush1.msra.mxu0 %v392
    %1470 = vmatprep.subr.mxu0 %v389
    %1471 = vmatpush1.msra.mxu0 %v388
    %1472 = vmatprep.subr.mxu0 %v385
    %1473 = vmatpush1.msra.mxu0 %v384
    %1474 = vmatprep.subr.mxu0 %v381
    %1475 = vmatpush1.msra.mxu0 %v380
    %1476 = vmatprep.subr.mxu0 0.0
    %1477 = vmatpush2.msra.mxu0 0.0
    %1478 = vmatprep.subr.mxu0 0.0
    %1479 = vmatpush2.msra.mxu0 0.0
    %1480 = vmatprep.subr.mxu0 0.0
    %1481 = vmatpush2.msra.mxu0 0.0
    %1482 = vmatprep.subr.mxu0 0.0
    %1483 = vmatpush2.msra.mxu0 0.0
    %1484 = vmatprep.subr.mxu0 0.0
    %1485 = vmatpush2.msra.mxu0 0.0
    %1486 = vmatprep.subr.mxu0 0.0
    %1487 = vmatpush2.msra.mxu0 0.0
    %1488 = vmatprep.subr.mxu0 0.0
    %1489 = vmatpush2.msra.mxu0 0.0
    %1490 = vmatprep.subr.mxu0 0.0
    %1491 = vmatpush2.msra.mxu0 0.0
    %1492 = vmatprep.subr.mxu0 0.0
    %1493 = vmatpush2.msra.mxu0 0.0
    %1494 = vmatprep.subr.mxu0 0.0
    %1495 = vmatpush2.msra.mxu0 0.0
    %1496 = vmatprep.subr.mxu0 0.0
    %1497 = vmatpush2.msra.mxu0 0.0
    %1498 = vmatprep.subr.mxu0 0.0
    %1499 = vmatpush2.msra.mxu0 0.0
    %1500 = vmatprep.subr.mxu0 0.0
    %1501 = vmatpush2.msra.mxu0 0.0
    %1502 = vmatprep.subr.mxu0 0.0
    %1503 = vmatpush2.msra.mxu0 0.0
    %1504 = vmatprep.subr.mxu0 0.0
    %1505 = vmatpush2.msra.mxu0 0.0
    %1506 = vmatprep.subr.mxu0 0.0
    %1507 = vmatpush2.msra.mxu0 0.0
    %1508 = vmatprep.mubr.f32.mxu0 0.0
    %1509 = vmatmul.mubr.f32.gmra.mxu0 %v1439
    %v1510 = vpop.f32.mrf.mxu0
    %v1511 = vadd.f32 0.0, %v1510
    %v1512 = vpop.f32.mrf.mxu0
    %v1513 = vadd.f32 0.0, %v1512
    %1514 = vdwg.mxu0
    %1515 = vmatprep.subr.mxu0 %v443
    %1516 = vmatpush1.msra.mxu0 %v442
    %1517 = vmatprep.subr.mxu0 %v439
    %1518 = vmatpush1.msra.mxu0 %v438
    %1519 = vmatprep.subr.mxu0 %v435
    %1520 = vmatpush1.msra.mxu0 %v434
    %1521 = vmatprep.subr.mxu0 %v431
    %1522 = vmatpush1.msra.mxu0 %v430
    %1523 = vmatprep.subr.mxu0 %v427
    %1524 = vmatpush1.msra.mxu0 %v426
    %1525 = vmatprep.subr.mxu0 %v423
    %1526 = vmatpush1.msra.mxu0 %v422
    %1527 = vmatprep.subr.mxu0 %v419
    %1528 = vmatpush1.msra.mxu0 %v418
    %1529 = vmatprep.subr.mxu0 %v415
    %1530 = vmatpush1.msra.mxu0 %v414
    %1531 = vmatprep.subr.mxu0 %v411
    %1532 = vmatpush1.msra.mxu0 %v410
    %1533 = vmatprep.subr.mxu0 %v407
    %1534 = vmatpush1.msra.mxu0 %v406
    %1535 = vmatprep.subr.mxu0 %v403
    %1536 = vmatpush1.msra.mxu0 %v402
    %1537 = vmatprep.subr.mxu0 %v399
    %1538 = vmatpush1.msra.mxu0 %v398
    %1539 = vmatprep.subr.mxu0 %v395
    %1540 = vmatpush1.msra.mxu0 %v394
    %1541 = vmatprep.subr.mxu0 %v391
    %1542 = vmatpush1.msra.mxu0 %v390
    %1543 = vmatprep.subr.mxu0 %v387
    %1544 = vmatpush1.msra.mxu0 %v386
    %1545 = vmatprep.subr.mxu0 %v383
    %1546 = vmatpush1.msra.mxu0 %v382
    %1547 = vmatprep.subr.mxu0 0.0
    %1548 = vmatpush2.msra.mxu0 0.0
    %1549 = vmatprep.subr.mxu0 0.0
    %1550 = vmatpush2.msra.mxu0 0.0
    %1551 = vmatprep.subr.mxu0 0.0
    %1552 = vmatpush2.msra.mxu0 0.0
    %1553 = vmatprep.subr.mxu0 0.0
    %1554 = vmatpush2.msra.mxu0 0.0
    %1555 = vmatprep.subr.mxu0 0.0
    %1556 = vmatpush2.msra.mxu0 0.0
    %1557 = vmatprep.subr.mxu0 0.0
    %1558 = vmatpush2.msra.mxu0 0.0
    %1559 = vmatprep.subr.mxu0 0.0
    %1560 = vmatpush2.msra.mxu0 0.0
    %1561 = vmatprep.subr.mxu0 0.0
    %1562 = vmatpush2.msra.mxu0 0.0
    %1563 = vmatprep.subr.mxu0 0.0
    %1564 = vmatpush2.msra.mxu0 0.0
    %1565 = vmatprep.subr.mxu0 0.0
    %1566 = vmatpush2.msra.mxu0 0.0
    %1567 = vmatprep.subr.mxu0 0.0
    %1568 = vmatpush2.msra.mxu0 0.0
    %1569 = vmatprep.subr.mxu0 0.0
    %1570 = vmatpush2.msra.mxu0 0.0
    %1571 = vmatprep.subr.mxu0 0.0
    %1572 = vmatpush2.msra.mxu0 0.0
    %1573 = vmatprep.subr.mxu0 0.0
    %1574 = vmatpush2.msra.mxu0 0.0
    %1575 = vmatprep.subr.mxu0 0.0
    %1576 = vmatpush2.msra.mxu0 0.0
    %1577 = vmatprep.subr.mxu0 0.0
    %1578 = vmatpush2.msra.mxu0 0.0
    %1579 = vmatprep.mubr.f32.mxu0 0.0
    %1580 = vmatmul.mubr.f32.gmra.mxu0 %v1439
    %v1581 = vpop.f32.mrf.mxu0
    %v1582 = vadd.f32 0.0, %v1581
    %v1583 = vpop.f32.mrf.mxu0
    %v1584 = vadd.f32 0.0, %v1583
    %1585 = vdwg.mxu0
    %v1590 = vcombine.low %v1511, %v1513
    %v1591 = vcombine.low %v1582, %v1584
    %v1593 = vunpack.c.l.s4 1983009808
    %v1594 = vunpack.c.0.s8 %v1593
    %v1595 = vlaneseq
    %v1596 = vshrl.u32 %v1595, 7
    %v1597 = vsub.s32 %v1594, %v1596
    %v1598 = vrot.slane %v1590, %v1597
    %v1600 = vunpack.c.l.s4 1983009808
    %v1601 = vunpack.c.0.s8 %v1600
    %v1602 = vlaneseq
    %v1603 = vshrl.u32 %v1602, 7
    %v1604 = vsub.s32 %v1601, %v1603
    %v1605 = vrot.slane %v1591, %v1604
    %v1606 = vcombine.low %v1598, %v1605
    %v1608 = vadd.f32 %v1443, %v1606
    %v1609 = vxor.u32 %v1608, 2147483648
    %v1610 = vmul.f32 %v1609, 1.442695
    %v1611 = vpow.pop %v1610
    %v1612 = vadd.f32 %v1611, 1.0
    %v1613 = vrcp.pop %v1612
    %v1614 = vmul.f32 1.0, %v1613
    %v1616 = vrot.slane %v1608, 2
    %v1618 = vxor.u32 %v1616, 2147483648
    %v1619 = vmul.f32 %v1618, 1.442695
    %v1620 = vpow.pop %v1619
    %v1621 = vadd.f32 %v1620, 1.0
    %v1622 = vrcp.pop %v1621
    %v1623 = vmul.f32 1.0, %v1622
    %v1624 = vrot.slane %v1608, 4
    %v1626 = vtanh.pop %v1624
    %v1627 = vrot.slane %v1608, 6
    %v1629 = vxor.u32 %v1627, 2147483648
    %v1630 = vmul.f32 %v1629, 1.442695
    %v1631 = vpow.pop %v1630
    %v1632 = vadd.f32 %v1631, 1.0
    %v1633 = vrcp.pop %v1632
    %v1634 = vmul.f32 1.0, %v1633
    %v1635 = vmul.f32 %v1623, %v1437
    %v1636 = vmul.f32 %v1614, %v1626
    %v1637 = vadd.f32 %v1635, %v1636
    %v1638 = vtanh.pop %v1637
    %v1639 = vmul.f32 %v1634, %v1638
    %s1640 = scalar_lea.vmem [#allocation3], 10
    %1641 = vst [vmem:[%s1640] sm:$0x3] %v1639
    %s1642 = scalar_lea.vmem [#allocation2], 48
    %v1643 = vld [vmem:[%s1642] sm:$0xff]
    %1644 = vmatprep.subr.mxu0 %v441
    %1645 = vmatpush1.msra.mxu0 %v440
    %1646 = vmatprep.subr.mxu0 %v437
    %1647 = vmatpush1.msra.mxu0 %v436
    %1648 = vmatprep.subr.mxu0 %v433
    %1649 = vmatpush1.msra.mxu0 %v432
    %1650 = vmatprep.subr.mxu0 %v429
    %1651 = vmatpush1.msra.mxu0 %v428
    %1652 = vmatprep.subr.mxu0 %v425
    %1653 = vmatpush1.msra.mxu0 %v424
    %1654 = vmatprep.subr.mxu0 %v421
    %1655 = vmatpush1.msra.mxu0 %v420
    %1656 = vmatprep.subr.mxu0 %v417
    %1657 = vmatpush1.msra.mxu0 %v416
    %1658 = vmatprep.subr.mxu0 %v413
    %1659 = vmatpush1.msra.mxu0 %v412
    %1660 = vmatprep.subr.mxu0 %v409
    %1661 = vmatpush1.msra.mxu0 %v408
    %1662 = vmatprep.subr.mxu0 %v405
    %1663 = vmatpush1.msra.mxu0 %v404
    %1664 = vmatprep.subr.mxu0 %v401
    %1665 = vmatpush1.msra.mxu0 %v400
    %1666 = vmatprep.subr.mxu0 %v397
    %1667 = vmatpush1.msra.mxu0 %v396
    %1668 = vmatprep.subr.mxu0 %v393
    %1669 = vmatpush1.msra.mxu0 %v392
    %1670 = vmatprep.subr.mxu0 %v389
    %1671 = vmatpush1.msra.mxu0 %v388
    %1672 = vmatprep.subr.mxu0 %v385
    %1673 = vmatpush1.msra.mxu0 %v384
    %1674 = vmatprep.subr.mxu0 %v381
    %1675 = vmatpush1.msra.mxu0 %v380
    %1676 = vmatprep.subr.mxu0 0.0
    %1677 = vmatpush2.msra.mxu0 0.0
    %1678 = vmatprep.subr.mxu0 0.0
    %1679 = vmatpush2.msra.mxu0 0.0
    %1680 = vmatprep.subr.mxu0 0.0
    %1681 = vmatpush2.msra.mxu0 0.0
    %1682 = vmatprep.subr.mxu0 0.0
    %1683 = vmatpush2.msra.mxu0 0.0
    %1684 = vmatprep.subr.mxu0 0.0
    %1685 = vmatpush2.msra.mxu0 0.0
    %1686 = vmatprep.subr.mxu0 0.0
    %1687 = vmatpush2.msra.mxu0 0.0
    %1688 = vmatprep.subr.mxu0 0.0
    %1689 = vmatpush2.msra.mxu0 0.0
    %1690 = vmatprep.subr.mxu0 0.0
    %1691 = vmatpush2.msra.mxu0 0.0
    %1692 = vmatprep.subr.mxu0 0.0
    %1693 = vmatpush2.msra.mxu0 0.0
    %1694 = vmatprep.subr.mxu0 0.0
    %1695 = vmatpush2.msra.mxu0 0.0
    %1696 = vmatprep.subr.mxu0 0.0
    %1697 = vmatpush2.msra.mxu0 0.0
    %1698 = vmatprep.subr.mxu0 0.0
    %1699 = vmatpush2.msra.mxu0 0.0
    %1700 = vmatprep.subr.mxu0 0.0
    %1701 = vmatpush2.msra.mxu0 0.0
    %1702 = vmatprep.subr.mxu0 0.0
    %1703 = vmatpush2.msra.mxu0 0.0
    %1704 = vmatprep.subr.mxu0 0.0
    %1705 = vmatpush2.msra.mxu0 0.0
    %1706 = vmatprep.subr.mxu0 0.0
    %1707 = vmatpush2.msra.mxu0 0.0
    %1708 = vmatprep.mubr.f32.mxu0 0.0
    %1709 = vmatmul.mubr.f32.gmra.mxu0 %v1639
    %v1710 = vpop.f32.mrf.mxu0
    %v1711 = vadd.f32 0.0, %v1710
    %v1712 = vpop.f32.mrf.mxu0
    %v1713 = vadd.f32 0.0, %v1712
    %1714 = vdwg.mxu0
    %1715 = vmatprep.subr.mxu0 %v443
    %1716 = vmatpush1.msra.mxu0 %v442
    %1717 = vmatprep.subr.mxu0 %v439
    %1718 = vmatpush1.msra.mxu0 %v438
    %1719 = vmatprep.subr.mxu0 %v435
    %1720 = vmatpush1.msra.mxu0 %v434
    %1721 = vmatprep.subr.mxu0 %v431
    %1722 = vmatpush1.msra.mxu0 %v430
    %1723 = vmatprep.subr.mxu0 %v427
    %1724 = vmatpush1.msra.mxu0 %v426
    %1725 = vmatprep.subr.mxu0 %v423
    %1726 = vmatpush1.msra.mxu0 %v422
    %1727 = vmatprep.subr.mxu0 %v419
    %1728 = vmatpush1.msra.mxu0 %v418
    %1729 = vmatprep.subr.mxu0 %v415
    %1730 = vmatpush1.msra.mxu0 %v414
    %1731 = vmatprep.subr.mxu0 %v411
    %1732 = vmatpush1.msra.mxu0 %v410
    %1733 = vmatprep.subr.mxu0 %v407
    %1734 = vmatpush1.msra.mxu0 %v406
    %1735 = vmatprep.subr.mxu0 %v403
    %1736 = vmatpush1.msra.mxu0 %v402
    %1737 = vmatprep.subr.mxu0 %v399
    %1738 = vmatpush1.msra.mxu0 %v398
    %1739 = vmatprep.subr.mxu0 %v395
    %1740 = vmatpush1.msra.mxu0 %v394
    %1741 = vmatprep.subr.mxu0 %v391
    %1742 = vmatpush1.msra.mxu0 %v390
    %1743 = vmatprep.subr.mxu0 %v387
    %1744 = vmatpush1.msra.mxu0 %v386
    %1745 = vmatprep.subr.mxu0 %v383
    %1746 = vmatpush1.msra.mxu0 %v382
    %1747 = vmatprep.subr.mxu0 0.0
    %1748 = vmatpush2.msra.mxu0 0.0
    %1749 = vmatprep.subr.mxu0 0.0
    %1750 = vmatpush2.msra.mxu0 0.0
    %1751 = vmatprep.subr.mxu0 0.0
    %1752 = vmatpush2.msra.mxu0 0.0
    %1753 = vmatprep.subr.mxu0 0.0
    %1754 = vmatpush2.msra.mxu0 0.0
    %1755 = vmatprep.subr.mxu0 0.0
    %1756 = vmatpush2.msra.mxu0 0.0
    %1757 = vmatprep.subr.mxu0 0.0
    %1758 = vmatpush2.msra.mxu0 0.0
    %1759 = vmatprep.subr.mxu0 0.0
    %1760 = vmatpush2.msra.mxu0 0.0
    %1761 = vmatprep.subr.mxu0 0.0
    %1762 = vmatpush2.msra.mxu0 0.0
    %1763 = vmatprep.subr.mxu0 0.0
    %1764 = vmatpush2.msra.mxu0 0.0
    %1765 = vmatprep.subr.mxu0 0.0
    %1766 = vmatpush2.msra.mxu0 0.0
    %1767 = vmatprep.subr.mxu0 0.0
    %1768 = vmatpush2.msra.mxu0 0.0
    %1769 = vmatprep.subr.mxu0 0.0
    %1770 = vmatpush2.msra.mxu0 0.0
    %1771 = vmatprep.subr.mxu0 0.0
    %1772 = vmatpush2.msra.mxu0 0.0
    %1773 = vmatprep.subr.mxu0 0.0
    %1774 = vmatpush2.msra.mxu0 0.0
    %1775 = vmatprep.subr.mxu0 0.0
    %1776 = vmatpush2.msra.mxu0 0.0
    %1777 = vmatprep.subr.mxu0 0.0
    %1778 = vmatpush2.msra.mxu0 0.0
    %1779 = vmatprep.mubr.f32.mxu0 0.0
    %1780 = vmatmul.mubr.f32.gmra.mxu0 %v1639
    %v1781 = vpop.f32.mrf.mxu0
    %v1782 = vadd.f32 0.0, %v1781
    %v1783 = vpop.f32.mrf.mxu0
    %v1784 = vadd.f32 0.0, %v1783
    %1785 = vdwg.mxu0
    %v1790 = vcombine.low %v1711, %v1713
    %v1791 = vcombine.low %v1782, %v1784
    %v1793 = vunpack.c.l.s4 1983009808
    %v1794 = vunpack.c.0.s8 %v1793
    %v1795 = vlaneseq
    %v1796 = vshrl.u32 %v1795, 7
    %v1797 = vsub.s32 %v1794, %v1796
    %v1798 = vrot.slane %v1790, %v1797
    %v1800 = vunpack.c.l.s4 1983009808
    %v1801 = vunpack.c.0.s8 %v1800
    %v1802 = vlaneseq
    %v1803 = vshrl.u32 %v1802, 7
    %v1804 = vsub.s32 %v1801, %v1803
    %v1805 = vrot.slane %v1791, %v1804
    %v1806 = vcombine.low %v1798, %v1805
    %v1808 = vadd.f32 %v1643, %v1806
    %v1809 = vxor.u32 %v1808, 2147483648
    %v1810 = vmul.f32 %v1809, 1.442695
    %v1811 = vpow.pop %v1810
    %v1812 = vadd.f32 %v1811, 1.0
    %v1813 = vrcp.pop %v1812
    %v1814 = vmul.f32 1.0, %v1813
    %v1816 = vrot.slane %v1808, 2
    %v1818 = vxor.u32 %v1816, 2147483648
    %v1819 = vmul.f32 %v1818, 1.442695
    %v1820 = vpow.pop %v1819
    %v1821 = vadd.f32 %v1820, 1.0
    %v1822 = vrcp.pop %v1821
    %v1823 = vmul.f32 1.0, %v1822
    %v1824 = vrot.slane %v1808, 4
    %v1826 = vtanh.pop %v1824
    %v1827 = vrot.slane %v1808, 6
    %v1829 = vxor.u32 %v1827, 2147483648
    %v1830 = vmul.f32 %v1829, 1.442695
    %v1831 = vpow.pop %v1830
    %v1832 = vadd.f32 %v1831, 1.0
    %v1833 = vrcp.pop %v1832
    %v1834 = vmul.f32 1.0, %v1833
    %v1835 = vmul.f32 %v1823, %v1637
    %v1836 = vmul.f32 %v1814, %v1826
    %v1837 = vadd.f32 %v1835, %v1836
    %v1838 = vtanh.pop %v1837
    %v1839 = vmul.f32 %v1834, %v1838
    %s1840 = scalar_lea.vmem [#allocation3], 12
    %1841 = vst [vmem:[%s1840] sm:$0x3] %v1839
    %s1842 = scalar_lea.vmem [#allocation2], 56
    %v1843 = vld [vmem:[%s1842] sm:$0xff]
    %1844 = vmatprep.subr.mxu0 %v441
    %1845 = vmatpush1.msra.mxu0 %v440
    %1846 = vmatprep.subr.mxu0 %v437
    %1847 = vmatpush1.msra.mxu0 %v436
    %1848 = vmatprep.subr.mxu0 %v433
    %1849 = vmatpush1.msra.mxu0 %v432
    %1850 = vmatprep.subr.mxu0 %v429
    %1851 = vmatpush1.msra.mxu0 %v428
    %1852 = vmatprep.subr.mxu0 %v425
    %1853 = vmatpush1.msra.mxu0 %v424
    %1854 = vmatprep.subr.mxu0 %v421
    %1855 = vmatpush1.msra.mxu0 %v420
    %1856 = vmatprep.subr.mxu0 %v417
    %1857 = vmatpush1.msra.mxu0 %v416
    %1858 = vmatprep.subr.mxu0 %v413
    %1859 = vmatpush1.msra.mxu0 %v412
    %1860 = vmatprep.subr.mxu0 %v409
    %1861 = vmatpush1.msra.mxu0 %v408
    %1862 = vmatprep.subr.mxu0 %v405
    %1863 = vmatpush1.msra.mxu0 %v404
    %1864 = vmatprep.subr.mxu0 %v401
    %1865 = vmatpush1.msra.mxu0 %v400
    %1866 = vmatprep.subr.mxu0 %v397
    %1867 = vmatpush1.msra.mxu0 %v396
    %1868 = vmatprep.subr.mxu0 %v393
    %1869 = vmatpush1.msra.mxu0 %v392
    %1870 = vmatprep.subr.mxu0 %v389
    %1871 = vmatpush1.msra.mxu0 %v388
    %1872 = vmatprep.subr.mxu0 %v385
    %1873 = vmatpush1.msra.mxu0 %v384
    %1874 = vmatprep.subr.mxu0 %v381
    %1875 = vmatpush1.msra.mxu0 %v380
    %1876 = vmatprep.subr.mxu0 0.0
    %1877 = vmatpush2.msra.mxu0 0.0
    %1878 = vmatprep.subr.mxu0 0.0
    %1879 = vmatpush2.msra.mxu0 0.0
    %1880 = vmatprep.subr.mxu0 0.0
    %1881 = vmatpush2.msra.mxu0 0.0
    %1882 = vmatprep.subr.mxu0 0.0
    %1883 = vmatpush2.msra.mxu0 0.0
    %1884 = vmatprep.subr.mxu0 0.0
    %1885 = vmatpush2.msra.mxu0 0.0
    %1886 = vmatprep.subr.mxu0 0.0
    %1887 = vmatpush2.msra.mxu0 0.0
    %1888 = vmatprep.subr.mxu0 0.0
    %1889 = vmatpush2.msra.mxu0 0.0
    %1890 = vmatprep.subr.mxu0 0.0
    %1891 = vmatpush2.msra.mxu0 0.0
    %1892 = vmatprep.subr.mxu0 0.0
    %1893 = vmatpush2.msra.mxu0 0.0
    %1894 = vmatprep.subr.mxu0 0.0
    %1895 = vmatpush2.msra.mxu0 0.0
    %1896 = vmatprep.subr.mxu0 0.0
    %1897 = vmatpush2.msra.mxu0 0.0
    %1898 = vmatprep.subr.mxu0 0.0
    %1899 = vmatpush2.msra.mxu0 0.0
    %1900 = vmatprep.subr.mxu0 0.0
    %1901 = vmatpush2.msra.mxu0 0.0
    %1902 = vmatprep.subr.mxu0 0.0
    %1903 = vmatpush2.msra.mxu0 0.0
    %1904 = vmatprep.subr.mxu0 0.0
    %1905 = vmatpush2.msra.mxu0 0.0
    %1906 = vmatprep.subr.mxu0 0.0
    %1907 = vmatpush2.msra.mxu0 0.0
    %1908 = vmatprep.mubr.f32.mxu0 0.0
    %1909 = vmatmul.mubr.f32.gmra.mxu0 %v1839
    %v1910 = vpop.f32.mrf.mxu0
    %v1911 = vadd.f32 0.0, %v1910
    %v1912 = vpop.f32.mrf.mxu0
    %v1913 = vadd.f32 0.0, %v1912
    %1914 = vdwg.mxu0
    %1915 = vmatprep.subr.mxu0 %v443
    %1916 = vmatpush1.msra.mxu0 %v442
    %1917 = vmatprep.subr.mxu0 %v439
    %1918 = vmatpush1.msra.mxu0 %v438
    %1919 = vmatprep.subr.mxu0 %v435
    %1920 = vmatpush1.msra.mxu0 %v434
    %1921 = vmatprep.subr.mxu0 %v431
    %1922 = vmatpush1.msra.mxu0 %v430
    %1923 = vmatprep.subr.mxu0 %v427
    %1924 = vmatpush1.msra.mxu0 %v426
    %1925 = vmatprep.subr.mxu0 %v423
    %1926 = vmatpush1.msra.mxu0 %v422
    %1927 = vmatprep.subr.mxu0 %v419
    %1928 = vmatpush1.msra.mxu0 %v418
    %1929 = vmatprep.subr.mxu0 %v415
    %1930 = vmatpush1.msra.mxu0 %v414
    %1931 = vmatprep.subr.mxu0 %v411
    %1932 = vmatpush1.msra.mxu0 %v410
    %1933 = vmatprep.subr.mxu0 %v407
    %1934 = vmatpush1.msra.mxu0 %v406
    %1935 = vmatprep.subr.mxu0 %v403
    %1936 = vmatpush1.msra.mxu0 %v402
    %1937 = vmatprep.subr.mxu0 %v399
    %1938 = vmatpush1.msra.mxu0 %v398
    %1939 = vmatprep.subr.mxu0 %v395
    %1940 = vmatpush1.msra.mxu0 %v394
    %1941 = vmatprep.subr.mxu0 %v391
    %1942 = vmatpush1.msra.mxu0 %v390
    %1943 = vmatprep.subr.mxu0 %v387
    %1944 = vmatpush1.msra.mxu0 %v386
    %1945 = vmatprep.subr.mxu0 %v383
    %1946 = vmatpush1.msra.mxu0 %v382
    %1947 = vmatprep.subr.mxu0 0.0
    %1948 = vmatpush2.msra.mxu0 0.0
    %1949 = vmatprep.subr.mxu0 0.0
    %1950 = vmatpush2.msra.mxu0 0.0
    %1951 = vmatprep.subr.mxu0 0.0
    %1952 = vmatpush2.msra.mxu0 0.0
    %1953 = vmatprep.subr.mxu0 0.0
    %1954 = vmatpush2.msra.mxu0 0.0
    %1955 = vmatprep.subr.mxu0 0.0
    %1956 = vmatpush2.msra.mxu0 0.0
    %1957 = vmatprep.subr.mxu0 0.0
    %1958 = vmatpush2.msra.mxu0 0.0
    %1959 = vmatprep.subr.mxu0 0.0
    %1960 = vmatpush2.msra.mxu0 0.0
    %1961 = vmatprep.subr.mxu0 0.0
    %1962 = vmatpush2.msra.mxu0 0.0
    %1963 = vmatprep.subr.mxu0 0.0
    %1964 = vmatpush2.msra.mxu0 0.0
    %1965 = vmatprep.subr.mxu0 0.0
    %1966 = vmatpush2.msra.mxu0 0.0
    %1967 = vmatprep.subr.mxu0 0.0
    %1968 = vmatpush2.msra.mxu0 0.0
    %1969 = vmatprep.subr.mxu0 0.0
    %1970 = vmatpush2.msra.mxu0 0.0
    %1971 = vmatprep.subr.mxu0 0.0
    %1972 = vmatpush2.msra.mxu0 0.0
    %1973 = vmatprep.subr.mxu0 0.0
    %1974 = vmatpush2.msra.mxu0 0.0
    %1975 = vmatprep.subr.mxu0 0.0
    %1976 = vmatpush2.msra.mxu0 0.0
    %1977 = vmatprep.subr.mxu0 0.0
    %1978 = vmatpush2.msra.mxu0 0.0
    %1979 = vmatprep.mubr.f32.mxu0 0.0
    %1980 = vmatmul.mubr.f32.gmra.mxu0 %v1839
    %v1981 = vpop.f32.mrf.mxu0
    %v1982 = vadd.f32 0.0, %v1981
    %v1983 = vpop.f32.mrf.mxu0
    %v1984 = vadd.f32 0.0, %v1983
    %1985 = vdwg.mxu0
    %v1990 = vcombine.low %v1911, %v1913
    %v1991 = vcombine.low %v1982, %v1984
    %v1993 = vunpack.c.l.s4 1983009808
    %v1994 = vunpack.c.0.s8 %v1993
    %v1995 = vlaneseq
    %v1996 = vshrl.u32 %v1995, 7
    %v1997 = vsub.s32 %v1994, %v1996
    %v1998 = vrot.slane %v1990, %v1997
    %v2000 = vunpack.c.l.s4 1983009808
    %v2001 = vunpack.c.0.s8 %v2000
    %v2002 = vlaneseq
    %v2003 = vshrl.u32 %v2002, 7
    %v2004 = vsub.s32 %v2001, %v2003
    %v2005 = vrot.slane %v1991, %v2004
    %v2006 = vcombine.low %v1998, %v2005
    %v2008 = vadd.f32 %v1843, %v2006
    %v2009 = vxor.u32 %v2008, 2147483648
    %v2010 = vmul.f32 %v2009, 1.442695
    %v2011 = vpow.pop %v2010
    %v2012 = vadd.f32 %v2011, 1.0
    %v2013 = vrcp.pop %v2012
    %v2014 = vmul.f32 1.0, %v2013
    %v2016 = vrot.slane %v2008, 2
    %v2018 = vxor.u32 %v2016, 2147483648
    %v2019 = vmul.f32 %v2018, 1.442695
    %v2020 = vpow.pop %v2019
    %v2021 = vadd.f32 %v2020, 1.0
    %v2022 = vrcp.pop %v2021
    %v2023 = vmul.f32 1.0, %v2022
    %v2024 = vrot.slane %v2008, 4
    %v2026 = vtanh.pop %v2024
    %v2027 = vrot.slane %v2008, 6
    %v2029 = vxor.u32 %v2027, 2147483648
    %v2030 = vmul.f32 %v2029, 1.442695
    %v2031 = vpow.pop %v2030
    %v2032 = vadd.f32 %v2031, 1.0
    %v2033 = vrcp.pop %v2032
    %v2034 = vmul.f32 1.0, %v2033
    %v2035 = vmul.f32 %v2023, %v1837
    %v2036 = vmul.f32 %v2014, %v2026
    %v2037 = vadd.f32 %v2035, %v2036
    %v2038 = vtanh.pop %v2037
    %v2039 = vmul.f32 %v2034, %v2038
    %s2040 = scalar_lea.vmem [#allocation3], 14
    %2041 = vst [vmem:[%s2040] sm:$0x3] %v2039
    %v2042 = vld [vmem:[#allocation3] sm:$0x3]
    %v2043 = vld [vmem:[#allocation3 + $0x2] sm:$0x3]
    %v2044 = vld [vmem:[#allocation3 + $0x4] sm:$0x3]
    %v2045 = vld [vmem:[#allocation3 + $0x6] sm:$0x3]
    %v2046 = vld [vmem:[#allocation3 + $0x8] sm:$0x3]
    %v2047 = vld [vmem:[#allocation3 + $0xa] sm:$0x3]
    %v2048 = vld [vmem:[#allocation3 + $0xc] sm:$0x3]
    %v2049 = vld [vmem:[#allocation3 + $0xe] sm:$0x3]
    %v2050 = vld [vmem:[%s4] sm:$0x1]
    %v2052 = vlaneseq
    %v2053 = vshrl.u32 %v2052, 7
    %v2054 = vsub.s32 0, %v2053
    %v2055 = vrot.slane %v2050, %v2054
    %v2057 = vmul.f32 %v2042, %v2055
    %v2058 = vmul.f32 %v2043, %v2055
    %v2059 = vmul.f32 %v2044, %v2055
    %v2060 = vmul.f32 %v2045, %v2055
    %v2061 = vmul.f32 %v2046, %v2055
    %v2062 = vmul.f32 %v2047, %v2055
    %v2063 = vmul.f32 %v2048, %v2055
    %v2064 = vmul.f32 %v2049, %v2055
    %vm2065 = vcmask 1041408
    %v2066 = vsel %vm2065, %v2057, 0.0
    %2067 = vadd.xlane.f32.xlu0 %v2066
    %v2068 = vpop.xlane.xlu0 %2067
    %v2069 = vsel %vm2065, %v2058, 0.0
    %2070 = vadd.xlane.f32.xlu0 %v2069
    %v2071 = vpop.xlane.xlu0 %2070
    %v2072 = vsel %vm2065, %v2059, 0.0
    %2073 = vadd.xlane.f32.xlu0 %v2072
    %v2074 = vpop.xlane.xlu0 %2073
    %v2075 = vsel %vm2065, %v2060, 0.0
    %2076 = vadd.xlane.f32.xlu0 %v2075
    %v2077 = vpop.xlane.xlu0 %2076
    %v2078 = vsel %vm2065, %v2061, 0.0
    %2079 = vadd.xlane.f32.xlu0 %v2078
    %v2080 = vpop.xlane.xlu0 %2079
    %v2081 = vsel %vm2065, %v2062, 0.0
    %2082 = vadd.xlane.f32.xlu0 %v2081
    %v2083 = vpop.xlane.xlu0 %2082
    %v2084 = vsel %vm2065, %v2063, 0.0
    %2085 = vadd.xlane.f32.xlu0 %v2084
    %v2086 = vpop.xlane.xlu0 %2085
    %v2087 = vsel %vm2065, %v2064, 0.0
    %2088 = vadd.xlane.f32.xlu0 %v2087
    %v2089 = vpop.xlane.xlu0 %2088
    %v2098 = vlaneseq
    %v2099 = vand.u32 %v2098, 127
    %v2100 = vlaneseq
    %v2101 = vshrl.u32 %v2100, 7
    %v2102 = vsub.s32 %v2099, %v2101
    %v2103 = vrot.slane %v2068, %v2102
    %v2104 = vlaneseq
    %v2105 = vshrl.u32 %v2104, 7
    %v2106 = vsub.s32 %v2099, %v2105
    %v2107 = vrot.slane %v2071, %v2106
    %v2108 = vlaneseq
    %v2109 = vshrl.u32 %v2108, 7
    %v2110 = vsub.s32 %v2099, %v2109
    %v2111 = vrot.slane %v2074, %v2110
    %v2112 = vlaneseq
    %v2113 = vshrl.u32 %v2112, 7
    %v2114 = vsub.s32 %v2099, %v2113
    %v2115 = vrot.slane %v2077, %v2114
    %v2116 = vlaneseq
    %v2117 = vshrl.u32 %v2116, 7
    %v2118 = vsub.s32 %v2099, %v2117
    %v2119 = vrot.slane %v2080, %v2118
    %v2120 = vlaneseq
    %v2121 = vshrl.u32 %v2120, 7
    %v2122 = vsub.s32 %v2099, %v2121
    %v2123 = vrot.slane %v2083, %v2122
    %v2124 = vlaneseq
    %v2125 = vshrl.u32 %v2124, 7
    %v2126 = vsub.s32 %v2099, %v2125
    %v2127 = vrot.slane %v2086, %v2126
    %v2128 = vlaneseq
    %v2129 = vshrl.u32 %v2128, 7
    %v2130 = vsub.s32 %v2099, %v2129
    %v2131 = vrot.slane %v2089, %v2130
    %vm2132 = vcmask 1041409
    %v2133 = vsel %vm2132, %v2107, %v2103
    %vm2134 = vcmask 1042434
    %v2135 = vsel %vm2134, %v2111, %v2133
    %vm2136 = vcmask 1043459
    %v2137 = vsel %vm2136, %v2115, %v2135
    %vm2138 = vcmask 1044484
    %v2139 = vsel %vm2138, %v2119, %v2137
    %vm2140 = vcmask 1045509
    %v2141 = vsel %vm2140, %v2123, %v2139
    %vm2142 = vcmask 1046534
    %v2143 = vsel %vm2142, %v2127, %v2141
    %vm2144 = vcmask 1047559
    %v2145 = vsel %vm2144, %v2131, %v2143
    %2147 = vxpose.xlu0.b32.start [1/16] %v2145, 128
    %2148 = vxpose.xlu0.b32.cont [2/16] 0.0, 128
    %2149 = vxpose.xlu0.b32.cont [3/16] 0.0, 128
    %2150 = vxpose.xlu0.b32.cont [4/16] 0.0, 128
    %2151 = vxpose.xlu0.b32.cont [5/16] 0.0, 128
    %2152 = vxpose.xlu0.b32.cont [6/16] 0.0, 128
    %2153 = vxpose.xlu0.b32.cont [7/16] 0.0, 128
    %2154 = vxpose.xlu0.b32.cont [8/16] 0.0, 128
    %2155 = vxpose.xlu0.b32.cont [9/16] 0.0, 128
    %2156 = vxpose.xlu0.b32.cont [10/16] 0.0, 128
    %2157 = vxpose.xlu0.b32.cont [11/16] 0.0, 128
    %2158 = vxpose.xlu0.b32.cont [12/16] 0.0, 128
    %2159 = vxpose.xlu0.b32.cont [13/16] 0.0, 128
    %2160 = vxpose.xlu0.b32.cont [14/16] 0.0, 128
    %2161 = vxpose.xlu0.b32.cont [15/16] 0.0, 128
    %2162 = vxpose.xlu0.b32.end [16/16] 0.0, 128
    %v2163 = vpop.trf.xlu0
    %v2164 = vpop.trf.xlu0
    %v2165 = vpop.trf.xlu0
    %v2166 = vpop.trf.xlu0
    %v2167 = vpop.trf.xlu0
    %v2168 = vpop.trf.xlu0
    %v2169 = vpop.trf.xlu0
    %v2170 = vpop.trf.xlu0
    %v2171 = vpop.trf.xlu0
    %v2172 = vpop.trf.xlu0
    %v2173 = vpop.trf.xlu0
    %v2174 = vpop.trf.xlu0
    %v2175 = vpop.trf.xlu0
    %v2176 = vpop.trf.xlu0
    %v2177 = vpop.trf.xlu0
    %v2178 = vpop.trf.xlu0
    %v2179 = vld [vmem:[#allocation4] sm:$0x1]
    %v2181 = vlaneseq
    %v2182 = vshrl.u32 %v2181, 7
    %v2183 = vsub.s32 0, %v2182
    %v2184 = vrot.slane %v2179, %v2183
    %2185 = vset.pattern.permute.xlu0 0
    %2186 = vperm.xlu0 %2185, %v2184
    %v2187 = vpop.permute.xlu0 %2186
    %v2189 = vadd.f32 %v2163, %v2187
    %vm2190 = vcmask 58368
    %2191 = vst.msk [vmem:[#allocation8] sm:$0x3] %vm2190, %v2189
    // Predicated region
    $region30: #{tpu_custom_call.1} parent=1 // pred_check
      _
    $region31: #{tpu_custom_call.1} parent=1 // pred_check_branch
      %2193 = sbr.rel (0) target = $region33
    $region32: #{tpu_custom_call.1} parent=1 // pred_region
      %s2195 = ssub.s32 32, 32
      %2196 = vsyncadd [#allocation7], %s2195
      %s2198 = sshll.u32 [#allocation8], 4
      %s2199 = int_to_ptr.vmem [resolvable:$true] %s2198
      %2201 = dma.vmem_to_hbm [thread:$0]  %s2199, 32, %s6, [#allocation7]
    $region33: #{tpu_custom_call.1} parent=1 // pred_fallthru
      _
    // Predicated region
    $region34: #{tpu_custom_call.1} parent=1 // pred_check
      _
    $region35: #{tpu_custom_call.1} parent=1 // pred_check_branch
      %2203 = sbr.rel (0) target = $region37
    $region36: #{tpu_custom_call.1} parent=1 // pred_region
      %2204 = dma.done [#allocation7], 32
    $region37: #{tpu_custom_call.1} parent=1 // pred_fallthru
      _
    %2205 = vsyncpa [#allocation6], 1
    %2206 = vsyncpa [#allocation7], 1

</llo_original>
